<compile_context>
chip_gen: v7x
topology: tpu7x:2x2x1
jax: 0.10.0
libtpu: 0.0.40
codegen_flags: <defaults>
</compile_context>

<pallas_src>
import jax
import jax.numpy as jnp
from jax.experimental import pallas as pl
from jax.experimental.pallas import tpu as pltpu


_LANE = 128
_SUB = 8


def _round_up(x, m):
    return (x + m - 1) // m * m


def _make_filter_kernel(h_chunk):
    """Builds the fused 1x1-conv MLP kernel for one (tm, F) row tile.

    x_ref : (tm, F)  input rows (cast in-kernel to the compute dtype)
    w1_ref: (F, H)   conv_1 weight, compute dtype (MXU RHS), grid-resident
    b1_ref: (1, H)   conv_1 bias, f32, lane-dense
    w2_ref: (1, H)   conv_2 weight, f32, lane-dense (VPU/XLU path)
    b2_ref: (1,)     conv_2 bias, f32, SMEM scalar
    o_ref : (tm, 1)  sigmoid output, f32
    """

    def kernel(x_ref, w1_ref, b1_ref, w2_ref, b2_ref, o_ref):
        cdt = w1_ref.dtype
        xt = x_ref[...].astype(cdt)            # no-op if x is already bf16
        H = w1_ref.shape[1]

        # Fuse conv_1 + LeakyReLU + (h * w2) + cross-lane reduce per H-chunk so
        # the full (tm, H) f32 hidden never has to live in VMEM at once.
        acc = jnp.zeros(o_ref.shape, jnp.float32)
        for c0 in range(0, H, h_chunk):
            c1 = min(c0 + h_chunk, H)
            # conv_1 chunk on the MXU, f32 accumulation.
            hc = jnp.dot(xt, w1_ref[:, c0:c1],
                         preferred_element_type=jnp.float32)
            hc = hc + b1_ref[:, c0:c1]
            # LeakyReLU(negative_slope=0.01): a single VPU max.
            hc = jnp.maximum(hc, 0.01 * hc)
            # conv_2 chunk in f32: VPU broadcast-multiply + XLU lane reduce
            # (keeps the MXU free; VPU/XLU slots are otherwise idle here).
            acc = acc + jnp.sum(hc * w2_ref[:, c0:c1], axis=-1, keepdims=True)

        logit = acc + b2_ref[0]
        # Exact sigmoid with one EUP op: sigmoid(x) = 0.5*tanh(x/2) + 0.5.
        o_ref[...] = (0.5 * jnp.tanh(0.5 * logit) + 0.5).astype(o_ref.dtype)

    return kernel


def filter_module_forward(x, w1, b1, w2, b2, *, tm=2048, h_chunk=256,
                          compute_dtype=jnp.bfloat16):
    """Filter_Module forward: sigmoid(leaky_relu(x @ W1 + b1) @ w2 + b2).

    x : (B, T, F) float32 (or bfloat16)  ->  (B, T, 1) float32
    w1: (F, 512)  b1: (512,)  w2: (512,)  b2: (1,)
    """
    B, T, F = x.shape
    H = w1.shape[1]
    M = B * T
    x2d = x.reshape(M, F)

    in_bytes = x.dtype.itemsize
    cd_bytes = jnp.dtype(compute_dtype).itemsize
    h_chunk = max(_LANE, min(h_chunk, H))

    F_pad = _round_up(F, _LANE)
    H_pad = _round_up(H, _LANE)
    hc_pad = _round_up(min(h_chunk, H), _LANE)

    # ---- generation-aware VMEM budget (v7x: 64 MiB/TC, v5e/v6e: 128 MiB) ----
    try:
        vmem_cap = int(pltpu.get_tpu_info().vmem_capacity_bytes)
    except Exception:
        vmem_cap = 64 * 1024 * 1024            # conservative (v7x per-core)
    vmem_budget = (vmem_cap * 3) // 4          # ~48 MiB v7x, ~96 MiB v5e/v6e

    def _vmem_estimate(tm_):
        # Lane/sublane-padded shapes, double-buffered where Pallas pipelines.
        x_tiles = 2 * tm_ * F_pad * in_bytes                    # X row tile
        w1_res = 2 * _round_up(F, _SUB) * H_pad * cd_bytes      # resident W1
        b1_res = 2 * _SUB * H_pad * 4                           # (1,H) f32
        w2_res = 2 * _SUB * H_pad * 4                           # (1,H) f32
        out_tiles = 2 * tm_ * _LANE * 4                         # (tm,1)->128 lanes
        hidden = 2 * tm_ * hc_pad * 4                           # live f32 H-chunk
        logit = tm_ * _LANE * 4                                 # accumulator
        return x_tiles + w1_res + b1_res + w2_res + out_tiles + hidden + logit

    # ---- row tiling ---------------------------------------------------------
    tm = _round_up(max(_SUB, min(tm, _round_up(M, _SUB))), _SUB)
    while tm > _SUB and _vmem_estimate(tm) > vmem_budget:
        tm = _round_up(tm // 2, _SUB)

    # Grid balancing: at least 2 (and an even number of) steps so v7x's two
    # TensorCores get equal, low-padding tiles; tm only shrinks here, so the
    # VMEM estimate above stays valid.
    steps = -(-M // tm)
    if steps == 1 and M >= 2 * _SUB:
        steps = 2
    if steps > 1 and steps % 2 == 1:
        steps += 1
    tm = _round_up(-(-M // steps), _SUB)
    M_pad = steps * tm
    if M_pad != M:
        x2d = jnp.pad(x2d, ((0, M_pad - M), (0, 0)))
    grid = (steps,)

    # ---- parameter layouts --------------------------------------------------
    w1c = w1.astype(compute_dtype)                    # (F, H), MXU RHS, resident
    b1_row = b1.reshape(1, H).astype(jnp.float32)     # (1, H) lane-dense
    w2_row = w2.reshape(1, H).astype(jnp.float32)     # (1, H) lane-dense, f32
    b2_1d = b2.reshape(1).astype(jnp.float32)         # (1,) -> SMEM scalar

    est = _vmem_estimate(tm)
    vmem_limit = int(min(max(32 * 1024 * 1024, est + (4 << 20)),
                         (vmem_cap * 7) // 8))

    cost = pl.CostEstimate(
        flops=2 * M_pad * F * H + 5 * M_pad * H,
        transcendentals=M_pad,                        # one tanh per row
        bytes_accessed=(M_pad * F * in_bytes + F * H * cd_bytes
                        + 2 * H * 4 + 4 + M_pad * 4),
    )

    kernel = _make_filter_kernel(h_chunk)

    out2d = pl.pallas_call(
        kernel,
        out_shape=jax.ShapeDtypeStruct((M_pad, 1), jnp.float32),
        grid_spec=pltpu.PrefetchScalarGridSpec(
            num_scalar_prefetch=0,
            grid=grid,
            in_specs=[
                pl.BlockSpec((tm, F), lambda i: (i, 0)),            # X row tile
                pl.BlockSpec((F, H), lambda i: (0, 0)),             # W1 resident
                pl.BlockSpec((1, H), lambda i: (0, 0)),             # b1 resident
                pl.BlockSpec((1, H), lambda i: (0, 0)),             # w2 resident
                pl.BlockSpec(memory_space=pltpu.MemorySpace.SMEM),  # b2 scalar
            ],
            out_specs=pl.BlockSpec((tm, 1), lambda i: (i, 0)),
        ),
        compiler_params=pltpu.CompilerParams(
            dimension_semantics=("parallel",),
            vmem_limit_bytes=vmem_limit,
        ),
        cost_estimate=cost,
    )(x2d, w1c, b1_row, w2_row, b2_1d)

    return out2d[:M].reshape(B, T, 1)


def init_params(key, len_feature, hidden=512):
    # Deterministic synthetic init (PyTorch-style uniform fan-in bounds).
    k1, k2, k3, k4 = jax.random.split(key, 4)
    bound1 = 1.0 / (len_feature ** 0.5)
    bound2 = 1.0 / (hidden ** 0.5)
    # Conv1d weight (out, in, 1) == dense (in, out) after squeeze/transpose.
    w1 = jax.random.uniform(k1, (len_feature, hidden), jnp.float32, -bound1, bound1)
    b1 = jax.random.uniform(k2, (hidden,), jnp.float32, -bound1, bound1)
    w2 = jax.random.uniform(k3, (hidden,), jnp.float32, -bound2, bound2)
    b2 = jax.random.uniform(k4, (1,), jnp.float32, -bound2, bound2)
    return w1, b1, w2, b2


if __name__ == "__main__":
    # Small shapes, but T chosen so the kernel exercises a multi-step grid
    # (M = 2*384 = 768 rows -> 2 balanced tiles of tm=384, zero padding).
    B, T, len_feature = 2, 384, 32
    key = jax.random.PRNGKey(0)
    kx, kp = jax.random.split(key)
    x = jax.random.normal(kx, (B, T, len_feature), jnp.float32)
    w1, b1, w2, b2 = init_params(kp, len_feature)

    fwd = jax.jit(filter_module_forward)
    out = fwd(x, w1, b1, w2, b2)
    jax.block_until_ready(out)
    assert out.shape == (B, T, 1)

    # Pure-JAX f32 reference (PyTorch semantics: 1x1 convs == dense layers).
    h_ref = x.reshape(-1, len_feature) @ w1 + b1
    h_ref = jnp.where(h_ref > 0, h_ref, 0.01 * h_ref)
    ref = jax.nn.sigmoid(h_ref @ w2[:, None] + b2).reshape(B, T, 1)

    # bf16 MXU operands for conv_1 => compare with loose tolerance (everything
    # after conv_1 is exact f32 now).
    max_err = float(jnp.max(jnp.abs(out - ref)))
    assert max_err < 2e-2, f"mismatch vs reference (max abs err {max_err})"

    print("KERNEL_OK")
</pallas_src>

<mosaic_0001>
module attributes {stable_mosaic.version = 11 : i64} {
  func.func @kernel(%arg0: i32, %arg1: memref<384x32xf32, #tpu.memory_space<vmem>>, %arg2: memref<32x512xbf16, #tpu.memory_space<vmem>>, %arg3: memref<1x512xf32, #tpu.memory_space<vmem>>, %arg4: memref<1x512xf32, #tpu.memory_space<vmem>>, %arg5: memref<1xf32, #tpu.memory_space<smem>>, %arg6: memref<384x1xf32, #tpu.memory_space<vmem>>) attributes {dimension_semantics = [#tpu.dimension_semantics<parallel>], iteration_bounds = array<i64: 2>, scalar_prefetch = 0 : i64, scratch_operands = 0 : i64, tpu.core_type = #tpu.core_type<tc>, window_params = [{transform_indices = @transform_0, window_bounds = array<i64: 384, 32>}, {pipeline_mode = #tpu.pipeline_mode<synchronous>, transform_indices = @transform_1, window_bounds = array<i64: 32, 512>}, {pipeline_mode = #tpu.pipeline_mode<synchronous>, transform_indices = @transform_2, window_bounds = array<i64: 1, 512>}, {pipeline_mode = #tpu.pipeline_mode<synchronous>, transform_indices = @transform_3, window_bounds = array<i64: 1, 512>}, {transform_indices = @transform_4, window_bounds = array<i64: 1>}, {transform_indices = @transform_5, window_bounds = array<i64: 384, 1>}]} {
    %c0 = arith.constant 0 : index
    %c0_0 = arith.constant 0 : index
    %0 = vector.load %arg1[%c0, %c0_0] : memref<384x32xf32, #tpu.memory_space<vmem>>, vector<384x32xf32>
    %1 = arith.truncf %0 : vector<384x32xf32> to vector<384x32xbf16>
    %cst = arith.constant 0.000000e+00 : f32
    %2 = vector.broadcast %cst : f32 to vector<384x1xf32>
    %c0_1 = arith.constant 0 : index
    %c0_2 = arith.constant 0 : index
    %3 = vector.load %arg2[%c0_1, %c0_2] : memref<32x512xbf16, #tpu.memory_space<vmem>>, vector<32x256xbf16>
    %cst_3 = arith.constant dense<0.000000e+00> : vector<384x256xf32>
    %4 = tpu.matmul %1, %3, %cst_3 {dimension_numbers = #tpu.dot_dimension_numbers<[1], [0], [0], [1], [0, 0, 1, 1], [], []>} : vector<384x32xbf16>, vector<32x256xbf16>, vector<384x256xf32> -> vector<384x256xf32>
    %c0_4 = arith.constant 0 : index
    %c0_5 = arith.constant 0 : index
    %5 = vector.load %arg3[%c0_4, %c0_5] : memref<1x512xf32, #tpu.memory_space<vmem>>, vector<1x256xf32>
    %6 = vector.broadcast %5 : vector<1x256xf32> to vector<384x256xf32>
    %7 = arith.addf %4, %6 : vector<384x256xf32>
    %cst_6 = arith.constant 0.00999999977 : f32
    %8 = vector.broadcast %cst_6 : f32 to vector<384x256xf32>
    %9 = arith.mulf %8, %7 : vector<384x256xf32>
    %10 = arith.maximumf %7, %9 : vector<384x256xf32>
    %c0_7 = arith.constant 0 : index
    %c0_8 = arith.constant 0 : index
    %11 = vector.load %arg4[%c0_7, %c0_8] : memref<1x512xf32, #tpu.memory_space<vmem>>, vector<1x256xf32>
    %12 = vector.broadcast %11 : vector<1x256xf32> to vector<384x256xf32>
    %13 = arith.mulf %10, %12 : vector<384x256xf32>
    %cst_9 = arith.constant dense<0.000000e+00> : vector<384xf32>
    %14 = vector.multi_reduction <add>, %13, %cst_9 [1] : vector<384x256xf32> to vector<384xf32>
    %15 = vector.shape_cast %14 : vector<384xf32> to vector<384x1xf32>
    %16 = arith.addf %2, %15 : vector<384x1xf32>
    %c0_10 = arith.constant 0 : index
    %c256 = arith.constant 256 : index
    %17 = vector.load %arg2[%c0_10, %c256] : memref<32x512xbf16, #tpu.memory_space<vmem>>, vector<32x256xbf16>
    %cst_11 = arith.constant dense<0.000000e+00> : vector<384x256xf32>
    %18 = tpu.matmul %1, %17, %cst_11 {dimension_numbers = #tpu.dot_dimension_numbers<[1], [0], [0], [1], [0, 0, 1, 1], [], []>} : vector<384x32xbf16>, vector<32x256xbf16>, vector<384x256xf32> -> vector<384x256xf32>
    %c0_12 = arith.constant 0 : index
    %c256_13 = arith.constant 256 : index
    %19 = vector.load %arg3[%c0_12, %c256_13] : memref<1x512xf32, #tpu.memory_space<vmem>>, vector<1x256xf32>
    %20 = vector.broadcast %19 : vector<1x256xf32> to vector<384x256xf32>
    %21 = arith.addf %18, %20 : vector<384x256xf32>
    %cst_14 = arith.constant 0.00999999977 : f32
    %22 = vector.broadcast %cst_14 : f32 to vector<384x256xf32>
    %23 = arith.mulf %22, %21 : vector<384x256xf32>
    %24 = arith.maximumf %21, %23 : vector<384x256xf32>
    %c0_15 = arith.constant 0 : index
    %c256_16 = arith.constant 256 : index
    %25 = vector.load %arg4[%c0_15, %c256_16] : memref<1x512xf32, #tpu.memory_space<vmem>>, vector<1x256xf32>
    %26 = vector.broadcast %25 : vector<1x256xf32> to vector<384x256xf32>
    %27 = arith.mulf %24, %26 : vector<384x256xf32>
    %cst_17 = arith.constant dense<0.000000e+00> : vector<384xf32>
    %28 = vector.multi_reduction <add>, %27, %cst_17 [1] : vector<384x256xf32> to vector<384xf32>
    %29 = vector.shape_cast %28 : vector<384xf32> to vector<384x1xf32>
    %30 = arith.addf %16, %29 : vector<384x1xf32>
    %c0_18 = arith.constant 0 : index
    %31 = memref.load %arg5[%c0_18] : memref<1xf32, #tpu.memory_space<smem>>
    %32 = vector.broadcast %31 : f32 to vector<384x1xf32>
    %33 = arith.addf %30, %32 : vector<384x1xf32>
    %cst_19 = arith.constant 5.000000e-01 : f32
    %34 = vector.broadcast %cst_19 : f32 to vector<384x1xf32>
    %35 = arith.mulf %34, %33 : vector<384x1xf32>
    %36 = math.tanh %35 : vector<384x1xf32>
    %cst_20 = arith.constant 5.000000e-01 : f32
    %37 = vector.broadcast %cst_20 : f32 to vector<384x1xf32>
    %38 = arith.mulf %37, %36 : vector<384x1xf32>
    %cst_21 = arith.constant 5.000000e-01 : f32
    %39 = vector.broadcast %cst_21 : f32 to vector<384x1xf32>
    %40 = arith.addf %38, %39 : vector<384x1xf32>
    %c0_22 = arith.constant 0 : index
    %c0_23 = arith.constant 0 : index
    %41 = vector.load %arg6[%c0_22, %c0_23] : memref<384x1xf32, #tpu.memory_space<vmem>>, vector<384x1xf32>
    tpu.vector_store %arg6[%c0_22, %c0_23], %40 {strides = array<i32>} : memref<384x1xf32, #tpu.memory_space<vmem>>, vector<384x1xf32>,
    return
  }
  func.func @transform_0(%arg0: i32) -> (i32, i32) {
    %c0_i32 = arith.constant 0 : i32
    %c0_i32_0 = arith.constant 0 : i32
    return %arg0, %c0_i32 : i32, i32
  }
  func.func @transform_1(%arg0: i32) -> (i32, i32) {
    %c0_i32 = arith.constant 0 : i32
    %c0_i32_0 = arith.constant 0 : i32
    %c0_i32_1 = arith.constant 0 : i32
    return %c0_i32, %c0_i32_0 : i32, i32
  }
  func.func @transform_2(%arg0: i32) -> (i32, i32) {
    %c0_i32 = arith.constant 0 : i32
    %c0_i32_0 = arith.constant 0 : i32
    %c0_i32_1 = arith.constant 0 : i32
    return %c0_i32, %c0_i32_0 : i32, i32
  }
  func.func @transform_3(%arg0: i32) -> (i32, i32) {
    %c0_i32 = arith.constant 0 : i32
    %c0_i32_0 = arith.constant 0 : i32
    %c0_i32_1 = arith.constant 0 : i32
    return %c0_i32, %c0_i32_0 : i32, i32
  }
  func.func @transform_4(%arg0: i32) -> i32 {
    %c0_i32 = arith.constant 0 : i32
    %c0_i32_0 = arith.constant 0 : i32
    return %c0_i32 : i32
  }
  func.func @transform_5(%arg0: i32) -> (i32, i32) {
    %c0_i32 = arith.constant 0 : i32
    %c0_i32_0 = arith.constant 0 : i32
    return %arg0, %c0_i32 : i32, i32
  }
}

</mosaic_0001>

<llo_original>
// kernel: filter_module_forward.1
$region0: #{filter_module_forward.1}
  #allocation0 [shape = 'u32[]', space=smem, size = 0x4, offset = 0x4, fixed_abs, tag = 'smem constant byte address 0x4 - core index']
  #allocation1 [shape = 'u32[144,128]{1,0:T(1,128)}', space=vmem, size = 0x12000, scoped, tag = 'internal scratch']
  #allocation2 [shape = 'f32[1]{0:T(128)S(6)}', space=smem, size = 0x200, scoped, tag = 'scoped memory for filter_module_forward.1']
  %s0 = inlined_call_operand.vmem [shape: f32[768,32], index: 0, kind: input, shape index: {}]
  %s1 = inlined_call_operand.vmem [shape: bf16[32,512], index: 1, kind: input, shape index: {}]
  %s2 = inlined_call_operand.vmem [shape: f32[1,512], index: 2, kind: input, shape index: {}]
  %s3 = inlined_call_operand.vmem [shape: f32[1,512], index: 3, kind: input, shape index: {}]
  %s4 = inlined_call_operand.<no memory space> [shape: f32[1], index: 4, kind: input, shape index: {}]
  %s5 = inlined_call_operand.vmem [shape: f32[768,1], index: 5, kind: output, shape index: {}]
  %s6 = sld [smem:[#allocation0]]
  $region53: #{filter_module_forward.1} parent=0
    _
  %s8 = ssub.s32 1, %s6
  %s9 = scalar_select 0, %s8, %s6
  %10 = sst [smem:[#allocation2]] %s4
  loop: start=0, step=1, limit=4
  $region2: #{filter_module_forward.1} parent=0 // loop_pre_header
    _
  $region3: #{filter_module_forward.1} parent=0 // loop_header
    %s12 = sphi 0, %s16
    %p13 = scmp.ge.s32.totalorder %s12, 4
    %s22 = sphi 0, %s24
    %s25 = sphi 0, %s22
    %s26 = sphi 0, %s25
    %s42 = sphi 0, %s26
    %s46 = sphi 0, %s46
    %s48 = sphi 0, %s46
    %s49 = sphi 0, %s48
    %s63 = sphi 0, %s49
    %s67 = sphi 0, %s67
    %s69 = sphi 0, %s67
    %s70 = sphi 0, %s69
    %s84 = sphi 0, %s70
    %s88 = sphi 0, %s88
    %s90 = sphi 0, %s88
    %s91 = sphi 0, %s90
    %s105 = sphi 0, %s91
    %s109 = sphi 0, %s109
    %s111 = sphi 0, %s109
    %s112 = sphi 0, %s111
    %s126 = sphi 0, %s112
    %s132 = sphi 0, %s134
    %s135 = sphi 0, %s132
    %s136 = sphi 0, %s135
    %s152 = sphi 0, %s136
  $region4: #{filter_module_forward.1} parent=0 // loop_header_branch
    %15 = sbr.rel (%p13) target = $region8
  $region5: #{filter_module_forward.1} parent=0 // loop_body
    %s17 = ssub.s32 %s12, 1
    %s18 = ssub.s32 %s12, 2
    %s19 = sadd.s32 %s12, 1
    %s20 = ssub.s32 %s12, %s19
    %p21 = scmp.eq.s32.totalorder %s20, 0
    %s23 = sadd.s32 %s22, 1
    %s24 = scalar_select %p21, %s22, %s23
    %p27 = pneg %p21
    %p28 = scmp.eq.s32.totalorder %s12, 1
    %p29 = por %p27, %p28
    %p30 = scmp.ne.s32.totalorder %s22, %s25
    %p31 = scmp.eq.s32.totalorder %s12, 0
    %p32 = por %p30, %p31
    %p33 = scmp.ne.s32.totalorder %s22, %s25
    %p34 = scmp.eq.s32.totalorder %s17, 1
    %p35 = por %p33, %p34
    %p36 = scmp.ne.s32.totalorder %s25, %s26
    %p37 = scmp.eq.s32.totalorder %s17, 0
    %p38 = por %p36, %p37
    %p39 = scmp.ne.s32.totalorder %s25, %s26
    %p40 = scmp.eq.s32.totalorder %s18, 1
    %p41 = por %p39, %p40
    %p43 = scmp.ne.s32.totalorder %s26, %s42
    %p44 = scmp.eq.s32.totalorder %s18, 0
    %p45 = por %p43, %p44
    %s47 = sadd.s32 %s46, 1
    %p50 = scmp.eq.s32.totalorder %s12, 1
    %p51 = scmp.ne.s32.totalorder %s46, %s48
    %p52 = scmp.eq.s32.totalorder %s12, 0
    %p53 = por %p51, %p52
    %p54 = scmp.ne.s32.totalorder %s46, %s48
    %p55 = scmp.eq.s32.totalorder %s17, 1
    %p56 = por %p54, %p55
    %p57 = scmp.ne.s32.totalorder %s48, %s49
    %p58 = scmp.eq.s32.totalorder %s17, 0
    %p59 = por %p57, %p58
    %p60 = scmp.ne.s32.totalorder %s48, %s49
    %p61 = scmp.eq.s32.totalorder %s18, 1
    %p62 = por %p60, %p61
    %p64 = scmp.ne.s32.totalorder %s49, %s63
    %p65 = scmp.eq.s32.totalorder %s18, 0
    %p66 = por %p64, %p65
    %s68 = sadd.s32 %s67, 1
    %p71 = scmp.eq.s32.totalorder %s12, 1
    %p72 = scmp.ne.s32.totalorder %s67, %s69
    %p73 = scmp.eq.s32.totalorder %s12, 0
    %p74 = por %p72, %p73
    %p75 = scmp.ne.s32.totalorder %s67, %s69
    %p76 = scmp.eq.s32.totalorder %s17, 1
    %p77 = por %p75, %p76
    %p78 = scmp.ne.s32.totalorder %s69, %s70
    %p79 = scmp.eq.s32.totalorder %s17, 0
    %p80 = por %p78, %p79
    %p81 = scmp.ne.s32.totalorder %s69, %s70
    %p82 = scmp.eq.s32.totalorder %s18, 1
    %p83 = por %p81, %p82
    %p85 = scmp.ne.s32.totalorder %s70, %s84
    %p86 = scmp.eq.s32.totalorder %s18, 0
    %p87 = por %p85, %p86
    %s89 = sadd.s32 %s88, 1
    %p92 = scmp.eq.s32.totalorder %s12, 1
    %p93 = scmp.ne.s32.totalorder %s88, %s90
    %p94 = scmp.eq.s32.totalorder %s12, 0
    %p95 = por %p93, %p94
    %p96 = scmp.ne.s32.totalorder %s88, %s90
    %p97 = scmp.eq.s32.totalorder %s17, 1
    %p98 = por %p96, %p97
    %p99 = scmp.ne.s32.totalorder %s90, %s91
    %p100 = scmp.eq.s32.totalorder %s17, 0
    %p101 = por %p99, %p100
    %p102 = scmp.ne.s32.totalorder %s90, %s91
    %p103 = scmp.eq.s32.totalorder %s18, 1
    %p104 = por %p102, %p103
    %p106 = scmp.ne.s32.totalorder %s91, %s105
    %p107 = scmp.eq.s32.totalorder %s18, 0
    %p108 = por %p106, %p107
    %s110 = sadd.s32 %s109, 1
    %p113 = scmp.eq.s32.totalorder %s12, 1
    %p114 = scmp.ne.s32.totalorder %s109, %s111
    %p115 = scmp.eq.s32.totalorder %s12, 0
    %p116 = por %p114, %p115
    %p117 = scmp.ne.s32.totalorder %s109, %s111
    %p118 = scmp.eq.s32.totalorder %s17, 1
    %p119 = por %p117, %p118
    %p120 = scmp.ne.s32.totalorder %s111, %s112
    %p121 = scmp.eq.s32.totalorder %s17, 0
    %p122 = por %p120, %p121
    %p123 = scmp.ne.s32.totalorder %s111, %s112
    %p124 = scmp.eq.s32.totalorder %s18, 1
    %p125 = por %p123, %p124
    %p127 = scmp.ne.s32.totalorder %s112, %s126
    %p128 = scmp.eq.s32.totalorder %s18, 0
    %p129 = por %p127, %p128
    %s130 = ssub.s32 %s12, %s19
    %p131 = scmp.eq.s32.totalorder %s130, 0
    %s133 = sadd.s32 %s132, 1
    %s134 = scalar_select %p131, %s132, %s133
    %p137 = pneg %p131
    %p138 = scmp.eq.s32.totalorder %s12, 1
    %p139 = por %p137, %p138
    %p140 = scmp.ne.s32.totalorder %s132, %s135
    %p141 = scmp.eq.s32.totalorder %s12, 0
    %p142 = por %p140, %p141
    %p143 = scmp.ne.s32.totalorder %s132, %s135
    %p144 = scmp.eq.s32.totalorder %s17, 1
    %p145 = por %p143, %p144
    %p146 = scmp.ne.s32.totalorder %s135, %s136
    %p147 = scmp.eq.s32.totalorder %s17, 0
    %p148 = por %p146, %p147
    %p149 = scmp.ne.s32.totalorder %s135, %s136
    %p150 = scmp.eq.s32.totalorder %s18, 1
    %p151 = por %p149, %p150
    %p153 = scmp.ne.s32.totalorder %s136, %s152
    %p154 = scmp.eq.s32.totalorder %s18, 0
    %p155 = por %p153, %p154
    %p156 = scmp.le.s32.totalorder 1, %s12
    %p157 = scmp.lt.s32.totalorder %s12, 3
    %p158 = pnand %p156, %p157
    %p159 = pneg %p158
    // Predicated region
    $region9: #{filter_module_forward.1} parent=5 // pred_check
      _
    $region10: #{filter_module_forward.1} parent=5 // pred_check_branch
      %161 = sbr.rel (%p158) target = $region12
    $region11: #{filter_module_forward.1} parent=5 // pred_region
      %s162 = ssub.s32 %s12, 1
      // Predicated region
      $region13: #{filter_module_forward.1} parent=11 // pred_check
        %p163 = pneg %p59
      $region14: #{filter_module_forward.1} parent=11 // pred_check_branch
        %165 = sbr.rel (%p163) target = $region16
      $region15: #{filter_module_forward.1} parent=11 // pred_region
        _
      $region16: #{filter_module_forward.1} parent=11 // pred_fallthru
        _
      // Predicated region
      $region17: #{filter_module_forward.1} parent=11 // pred_check
        %p166 = pneg %p80
      $region18: #{filter_module_forward.1} parent=11 // pred_check_branch
        %168 = sbr.rel (%p166) target = $region20
      $region19: #{filter_module_forward.1} parent=11 // pred_region
        _
      $region20: #{filter_module_forward.1} parent=11 // pred_fallthru
        _
      // Predicated region
      $region21: #{filter_module_forward.1} parent=11 // pred_check
        %p169 = pneg %p101
      $region22: #{filter_module_forward.1} parent=11 // pred_check_branch
        %171 = sbr.rel (%p169) target = $region24
      $region23: #{filter_module_forward.1} parent=11 // pred_region
        _
      $region24: #{filter_module_forward.1} parent=11 // pred_fallthru
        _
      // Predicated region
      $region25: #{filter_module_forward.1} parent=11 // pred_check
        %p172 = pneg %p122
      $region26: #{filter_module_forward.1} parent=11 // pred_check_branch
        %174 = sbr.rel (%p172) target = $region28
      $region27: #{filter_module_forward.1} parent=11 // pred_region
        _
      $region28: #{filter_module_forward.1} parent=11 // pred_fallthru
        _
    $region12: #{filter_module_forward.1} parent=5 // pred_fallthru
      _
    %p175 = scmp.lt.s32.totalorder %s12, 2
    // Predicated region
    $region29: #{filter_module_forward.1} parent=5 // pred_check
      %p176 = pneg %p175
    $region30: #{filter_module_forward.1} parent=5 // pred_check_branch
      %178 = sbr.rel (%p176) target = $region32
    $region31: #{filter_module_forward.1} parent=5 // pred_region
      // Predicated region
      $region33: #{filter_module_forward.1} parent=31 // pred_check
        %p179 = pneg %p32
      $region34: #{filter_module_forward.1} parent=31 // pred_check_branch
        %181 = sbr.rel (%p179) target = $region36
      $region35: #{filter_module_forward.1} parent=31 // pred_region
        %s182 = smul.u32 48, %s12
        %p183 = scmp.lt.s32.totalorder %s182, 95
        %s184 = scalar_select %p183, %s182, 95
        %s185 = smul.addr %s184, 8
        %s186 = scalar_lea.vmem %s0, %s185
        %s187 = smul.u32 48, %s12
      $region36: #{filter_module_forward.1} parent=31 // pred_fallthru
        _
    $region32: #{filter_module_forward.1} parent=5 // pred_fallthru
      _
    %p188 = scmp.le.s32.totalorder 1, %s12
    %p189 = scmp.lt.s32.totalorder %s12, 3
    %p190 = pnand %p188, %p189
    %p191 = pneg %p190
    // Predicated region
    $region37: #{filter_module_forward.1} parent=5 // pred_check
      _
    $region38: #{filter_module_forward.1} parent=5 // pred_check_branch
      %193 = sbr.rel (%p190) target = $region40
    $region39: #{filter_module_forward.1} parent=5 // pred_region
      %s194 = ssub.s32 %s12, 1
      %s195 = smul.u32 48, %s17
      %p196 = scmp.lt.s32.totalorder %s195, 95
      %s197 = scalar_select %p196, %s195, 95
      %s198 = smul.addr %s197, 8
      %s199 = scalar_lea.vmem %s0, %s198
      %p200 = pneg %p38
      %p201 = pneg %p35
      %p202 = pneg %p59
      %p203 = pneg %p56
      %p204 = pneg %p80
      %p205 = pneg %p77
      %p206 = pneg %p101
      %p207 = pneg %p98
      %p208 = pneg %p122
      %p209 = pneg %p119
      %p210 = pneg %p148
      %p211 = pneg %p145
      %s212 = smul.u32 48, %s17
      %p213 = scmp.lt.s32.totalorder %s212, 95
      %s214 = scalar_select %p213, %s212, 95
      %s215 = smul.addr %s214, 8
      %s216 = scalar_lea.vmem %s5, %s215
      %s217 = smul.u32 48, %s17
      %p218 = scmp.lt.s32.totalorder %s217, 95
      %s219 = scalar_select %p218, %s217, 95
      %s220 = smul.addr %s219, 8
      %s221 = scalar_lea.vmem %s0, %s220
      %s222 = smul.u32 48, %s17
      %s223 = smul.u32 48, %s17
      %p224 = scmp.lt.s32.totalorder %s223, 95
      %s225 = scalar_select %p224, %s223, 95
      %s226 = smul.addr %s225, 8
      %s227 = scalar_lea.vmem %s5, %s226
      %s228 = smul.u32 48, %s17
      %v230 = vld [vmem:[%s221] sm:$0xff]
      %v231 = vld [vmem:[%s221 + $0x8] sm:$0xff]
      %v232 = vld [vmem:[%s221 + $0x10] sm:$0xff]
      %v233 = vld [vmem:[%s221 + $0x18] sm:$0xff]
      %v234 = vld [vmem:[%s221 + $0x20] sm:$0xff]
      %v235 = vld [vmem:[%s221 + $0x28] sm:$0xff]
      %v236 = vld [vmem:[%s221 + $0x30] sm:$0xff]
      %v237 = vld [vmem:[%s221 + $0x38] sm:$0xff]
      %v238 = vld [vmem:[%s221 + $0x40] sm:$0xff]
      %v239 = vld [vmem:[%s221 + $0x48] sm:$0xff]
      %v240 = vld [vmem:[%s221 + $0x50] sm:$0xff]
      %v241 = vld [vmem:[%s221 + $0x58] sm:$0xff]
      %v242 = vld [vmem:[%s221 + $0x60] sm:$0xff]
      %v243 = vld [vmem:[%s221 + $0x68] sm:$0xff]
      %v244 = vld [vmem:[%s221 + $0x70] sm:$0xff]
      %v245 = vld [vmem:[%s221 + $0x78] sm:$0xff]
      %v246 = vld [vmem:[%s221 + $0x80] sm:$0xff]
      %v247 = vld [vmem:[%s221 + $0x88] sm:$0xff]
      %v248 = vld [vmem:[%s221 + $0x90] sm:$0xff]
      %v249 = vld [vmem:[%s221 + $0x98] sm:$0xff]
      %v250 = vld [vmem:[%s221 + $0xa0] sm:$0xff]
      %v251 = vld [vmem:[%s221 + $0xa8] sm:$0xff]
      %v252 = vld [vmem:[%s221 + $0xb0] sm:$0xff]
      %v253 = vld [vmem:[%s221 + $0xb8] sm:$0xff]
      %v254 = vld [vmem:[%s221 + $0xc0] sm:$0xff]
      %v255 = vld [vmem:[%s221 + $0xc8] sm:$0xff]
      %v256 = vld [vmem:[%s221 + $0xd0] sm:$0xff]
      %v257 = vld [vmem:[%s221 + $0xd8] sm:$0xff]
      %v258 = vld [vmem:[%s221 + $0xe0] sm:$0xff]
      %v259 = vld [vmem:[%s221 + $0xe8] sm:$0xff]
      %v260 = vld [vmem:[%s221 + $0xf0] sm:$0xff]
      %v261 = vld [vmem:[%s221 + $0xf8] sm:$0xff]
      %v262 = vld [vmem:[%s221 + $0x100] sm:$0xff]
      %v263 = vld [vmem:[%s221 + $0x108] sm:$0xff]
      %v264 = vld [vmem:[%s221 + $0x110] sm:$0xff]
      %v265 = vld [vmem:[%s221 + $0x118] sm:$0xff]
      %v266 = vld [vmem:[%s221 + $0x120] sm:$0xff]
      %v267 = vld [vmem:[%s221 + $0x128] sm:$0xff]
      %v268 = vld [vmem:[%s221 + $0x130] sm:$0xff]
      %v269 = vld [vmem:[%s221 + $0x138] sm:$0xff]
      %v270 = vld [vmem:[%s221 + $0x140] sm:$0xff]
      %v271 = vld [vmem:[%s221 + $0x148] sm:$0xff]
      %v272 = vld [vmem:[%s221 + $0x150] sm:$0xff]
      %v273 = vld [vmem:[%s221 + $0x158] sm:$0xff]
      %v274 = vld [vmem:[%s221 + $0x160] sm:$0xff]
      %v275 = vld [vmem:[%s221 + $0x168] sm:$0xff]
      %v276 = vld [vmem:[%s221 + $0x170] sm:$0xff]
      %v277 = vld [vmem:[%s221 + $0x178] sm:$0xff]
      %v278 = vpack.c.bf16 %v231, %v230
      %v279 = vpack.c.bf16 %v233, %v232
      %v280 = vpack.c.bf16 %v235, %v234
      %v281 = vpack.c.bf16 %v237, %v236
      %v282 = vpack.c.bf16 %v239, %v238
      %v283 = vpack.c.bf16 %v241, %v240
      %v284 = vpack.c.bf16 %v243, %v242
      %v285 = vpack.c.bf16 %v245, %v244
      %v286 = vpack.c.bf16 %v247, %v246
      %v287 = vpack.c.bf16 %v249, %v248
      %v288 = vpack.c.bf16 %v251, %v250
      %v289 = vpack.c.bf16 %v253, %v252
      %v290 = vpack.c.bf16 %v255, %v254
      %v291 = vpack.c.bf16 %v257, %v256
      %v292 = vpack.c.bf16 %v259, %v258
      %v293 = vpack.c.bf16 %v261, %v260
      %v294 = vpack.c.bf16 %v263, %v262
      %v295 = vpack.c.bf16 %v265, %v264
      %v296 = vpack.c.bf16 %v267, %v266
      %v297 = vpack.c.bf16 %v269, %v268
      %v298 = vpack.c.bf16 %v271, %v270
      %v299 = vpack.c.bf16 %v273, %v272
      %v300 = vpack.c.bf16 %v275, %v274
      %v301 = vpack.c.bf16 %v277, %v276
      %v302 = vld [vmem:[%s1] sm:$0xff]
      %v303 = vld [vmem:[%s1 + $0x10] sm:$0xff]
      %v304 = vld [vmem:[%s1 + $0x20] sm:$0xff]
      %v305 = vld [vmem:[%s1 + $0x30] sm:$0xff]
      %v306 = vld [vmem:[%s2] sm:$0x3]
      %v308 = vlaneseq
      %v309 = vshrl.u32 %v308, 7
      %v310 = vsub.s32 0, %v309
      %v311 = vrot.slane %v306, %v310
      %v312 = vlaneseq
      %v313 = vshrl.u32 %v312, 7
      %v314 = vsub.s32 1, %v313
      %v315 = vrot.slane %v306, %v314
      %v322 = vunpack.c.l.b16 %v302
      %v323 = vunpack.c.h.b16 %v302
      %v324 = vunpack.c.l.b16 %v303
      %v325 = vunpack.c.h.b16 %v303
      %v326 = vunpack.c.l.b16 %v304
      %v327 = vunpack.c.h.b16 %v304
      %v328 = vunpack.c.l.b16 %v305
      %v329 = vunpack.c.h.b16 %v305
      %v330 = vpack.c.b16 %v324, %v322
      %v331 = vpack.c.b16 %v325, %v323
      %v332 = vpack.c.b16 %v328, %v326
      %v333 = vpack.c.b16 %v329, %v327
      %vm338 = vcmask 261120
      %v340 = vsel %vm338, %v278, 0
      %v343 = vsel %vm338, %v279, 0
      %v346 = vsel %vm338, %v280, 0
      %v349 = vsel %vm338, %v281, 0
      %v352 = vsel %vm338, %v282, 0
      %v355 = vsel %vm338, %v283, 0
      %v358 = vsel %vm338, %v284, 0
      %v361 = vsel %vm338, %v285, 0
      %v364 = vsel %vm338, %v286, 0
      %v367 = vsel %vm338, %v287, 0
      %v370 = vsel %vm338, %v288, 0
      %v373 = vsel %vm338, %v289, 0
      %v376 = vsel %vm338, %v290, 0
      %v379 = vsel %vm338, %v291, 0
      %v382 = vsel %vm338, %v292, 0
      %v385 = vsel %vm338, %v293, 0
      %v388 = vsel %vm338, %v294, 0
      %v391 = vsel %vm338, %v295, 0
      %v394 = vsel %vm338, %v296, 0
      %v397 = vsel %vm338, %v297, 0
      %v400 = vsel %vm338, %v298, 0
      %v403 = vsel %vm338, %v299, 0
      %v406 = vsel %vm338, %v300, 0
      %v409 = vsel %vm338, %v301, 0
      %411 = vmatprep.subr.bf16.mxu0 %v331
      %412 = vmatpush1.bf16.msra.mxu0 %v330
      %413 = vmatprep.subr.bf16.mxu0 %v333
      %414 = vmatpush1.bf16.msra.mxu0 %v332
      %415 = vmatprep.subr.bf16.mxu0 0
      %416 = vmatpush1.bf16.msra.mxu0 0
      %417 = vmatprep.subr.bf16.mxu0 0
      %418 = vmatpush1.bf16.msra.mxu0 0
      %419 = vmatprep.subr.bf16.mxu0 0
      %420 = vmatpush1.bf16.msra.mxu0 0
      %421 = vmatprep.subr.bf16.mxu0 0
      %422 = vmatpush1.bf16.msra.mxu0 0
      %423 = vmatprep.subr.bf16.mxu0 0
      %424 = vmatpush1.bf16.msra.mxu0 0
      %425 = vmatprep.subr.bf16.mxu0 0
      %426 = vmatpush1.bf16.msra.mxu0 0
      %427 = vmatprep.subr.bf16.mxu0 0
      %428 = vmatpush1.bf16.msra.mxu0 0
      %429 = vmatprep.subr.bf16.mxu0 0
      %430 = vmatpush1.bf16.msra.mxu0 0
      %431 = vmatprep.subr.bf16.mxu0 0
      %432 = vmatpush1.bf16.msra.mxu0 0
      %433 = vmatprep.subr.bf16.mxu0 0
      %434 = vmatpush1.bf16.msra.mxu0 0
      %435 = vmatprep.subr.bf16.mxu0 0
      %436 = vmatpush1.bf16.msra.mxu0 0
      %437 = vmatprep.subr.bf16.mxu0 0
      %438 = vmatpush1.bf16.msra.mxu0 0
      %439 = vmatprep.subr.bf16.mxu0 0
      %440 = vmatpush1.bf16.msra.mxu0 0
      %441 = vmatprep.subr.bf16.mxu0 0
      %442 = vmatpush1.bf16.msra.mxu0 0
      %443 = vmatprep.mubr.bf16.mxu0 0
      %444 = vmatmul.mubr.bf16.gmra.mrb[0].mxu0 %v340
      %v445 = vpop.f32.mrb[0].mxu0
      %v446 = vadd.f32 %v311, %v445
      %v447 = vpop.f32.mrb[0].mxu0
      %v448 = vadd.f32 %v315, %v447
      %v449 = vpop.f32.mrb[0].mxu0
      %v450 = vadd.f32 %v311, %v449
      %v451 = vpop.f32.mrb[0].mxu0
      %v452 = vadd.f32 %v315, %v451
      %453 = vmatprep.mubr.bf16.mxu0 0
      %454 = vmatmul.mubr.bf16.gmra.mrb[0].mxu0 %v343
      %v455 = vpop.f32.mrb[0].mxu0
      %v456 = vadd.f32 %v311, %v455
      %v457 = vpop.f32.mrb[0].mxu0
      %v458 = vadd.f32 %v315, %v457
      %v459 = vpop.f32.mrb[0].mxu0
      %v460 = vadd.f32 %v311, %v459
      %v461 = vpop.f32.mrb[0].mxu0
      %v462 = vadd.f32 %v315, %v461
      %463 = vmatprep.mubr.bf16.mxu0 0
      %464 = vmatmul.mubr.bf16.gmra.mrb[0].mxu0 %v346
      %v465 = vpop.f32.mrb[0].mxu0
      %v466 = vadd.f32 %v311, %v465
      %v467 = vpop.f32.mrb[0].mxu0
      %v468 = vadd.f32 %v315, %v467
      %v469 = vpop.f32.mrb[0].mxu0
      %v470 = vadd.f32 %v311, %v469
      %v471 = vpop.f32.mrb[0].mxu0
      %v472 = vadd.f32 %v315, %v471
      %473 = vmatprep.mubr.bf16.mxu0 0
      %474 = vmatmul.mubr.bf16.gmra.mrb[0].mxu0 %v349
      %v475 = vpop.f32.mrb[0].mxu0
      %v476 = vadd.f32 %v311, %v475
      %v477 = vpop.f32.mrb[0].mxu0
      %v478 = vadd.f32 %v315, %v477
      %v479 = vpop.f32.mrb[0].mxu0
      %v480 = vadd.f32 %v311, %v479
      %v481 = vpop.f32.mrb[0].mxu0
      %v482 = vadd.f32 %v315, %v481
      %483 = vmatprep.mubr.bf16.mxu0 0
      %484 = vmatmul.mubr.bf16.gmra.mrb[0].mxu0 %v352
      %v485 = vpop.f32.mrb[0].mxu0
      %v486 = vadd.f32 %v311, %v485
      %v487 = vpop.f32.mrb[0].mxu0
      %v488 = vadd.f32 %v315, %v487
      %v489 = vpop.f32.mrb[0].mxu0
      %v490 = vadd.f32 %v311, %v489
      %v491 = vpop.f32.mrb[0].mxu0
      %v492 = vadd.f32 %v315, %v491
      %493 = vmatprep.mubr.bf16.mxu0 0
      %494 = vmatmul.mubr.bf16.gmra.mrb[0].mxu0 %v355
      %v495 = vpop.f32.mrb[0].mxu0
      %v496 = vadd.f32 %v311, %v495
      %v497 = vpop.f32.mrb[0].mxu0
      %v498 = vadd.f32 %v315, %v497
      %v499 = vpop.f32.mrb[0].mxu0
      %v500 = vadd.f32 %v311, %v499
      %v501 = vpop.f32.mrb[0].mxu0
      %v502 = vadd.f32 %v315, %v501
      %503 = vmatprep.mubr.bf16.mxu0 0
      %504 = vmatmul.mubr.bf16.gmra.mrb[0].mxu0 %v358
      %v505 = vpop.f32.mrb[0].mxu0
      %v506 = vadd.f32 %v311, %v505
      %v507 = vpop.f32.mrb[0].mxu0
      %v508 = vadd.f32 %v315, %v507
      %v509 = vpop.f32.mrb[0].mxu0
      %v510 = vadd.f32 %v311, %v509
      %v511 = vpop.f32.mrb[0].mxu0
      %v512 = vadd.f32 %v315, %v511
      %513 = vmatprep.mubr.bf16.mxu0 0
      %514 = vmatmul.mubr.bf16.gmra.mrb[0].mxu0 %v361
      %v515 = vpop.f32.mrb[0].mxu0
      %v516 = vadd.f32 %v311, %v515
      %v517 = vpop.f32.mrb[0].mxu0
      %v518 = vadd.f32 %v315, %v517
      %v519 = vpop.f32.mrb[0].mxu0
      %v520 = vadd.f32 %v311, %v519
      %v521 = vpop.f32.mrb[0].mxu0
      %v522 = vadd.f32 %v315, %v521
      %523 = vmatprep.mubr.bf16.mxu0 0
      %524 = vmatmul.mubr.bf16.gmra.mrb[0].mxu0 %v364
      %v525 = vpop.f32.mrb[0].mxu0
      %v526 = vadd.f32 %v311, %v525
      %v527 = vpop.f32.mrb[0].mxu0
      %v528 = vadd.f32 %v315, %v527
      %v529 = vpop.f32.mrb[0].mxu0
      %v530 = vadd.f32 %v311, %v529
      %v531 = vpop.f32.mrb[0].mxu0
      %v532 = vadd.f32 %v315, %v531
      %533 = vmatprep.mubr.bf16.mxu0 0
      %534 = vmatmul.mubr.bf16.gmra.mrb[0].mxu0 %v367
      %v535 = vpop.f32.mrb[0].mxu0
      %v536 = vadd.f32 %v311, %v535
      %v537 = vpop.f32.mrb[0].mxu0
      %v538 = vadd.f32 %v315, %v537
      %v539 = vpop.f32.mrb[0].mxu0
      %v540 = vadd.f32 %v311, %v539
      %v541 = vpop.f32.mrb[0].mxu0
      %v542 = vadd.f32 %v315, %v541
      %543 = vmatprep.mubr.bf16.mxu0 0
      %544 = vmatmul.mubr.bf16.gmra.mrb[0].mxu0 %v370
      %v545 = vpop.f32.mrb[0].mxu0
      %v546 = vadd.f32 %v311, %v545
      %v547 = vpop.f32.mrb[0].mxu0
      %v548 = vadd.f32 %v315, %v547
      %v549 = vpop.f32.mrb[0].mxu0
      %v550 = vadd.f32 %v311, %v549
      %v551 = vpop.f32.mrb[0].mxu0
      %v552 = vadd.f32 %v315, %v551
      %553 = vmatprep.mubr.bf16.mxu0 0
      %554 = vmatmul.mubr.bf16.gmra.mrb[0].mxu0 %v373
      %v555 = vpop.f32.mrb[0].mxu0
      %v556 = vadd.f32 %v311, %v555
      %v557 = vpop.f32.mrb[0].mxu0
      %v558 = vadd.f32 %v315, %v557
      %v559 = vpop.f32.mrb[0].mxu0
      %v560 = vadd.f32 %v311, %v559
      %v561 = vpop.f32.mrb[0].mxu0
      %v562 = vadd.f32 %v315, %v561
      %563 = vmatprep.mubr.bf16.mxu0 0
      %564 = vmatmul.mubr.bf16.gmra.mrb[0].mxu0 %v376
      %v565 = vpop.f32.mrb[0].mxu0
      %v566 = vadd.f32 %v311, %v565
      %v567 = vpop.f32.mrb[0].mxu0
      %v568 = vadd.f32 %v315, %v567
      %v569 = vpop.f32.mrb[0].mxu0
      %v570 = vadd.f32 %v311, %v569
      %v571 = vpop.f32.mrb[0].mxu0
      %v572 = vadd.f32 %v315, %v571
      %573 = vmatprep.mubr.bf16.mxu0 0
      %574 = vmatmul.mubr.bf16.gmra.mrb[0].mxu0 %v379
      %v575 = vpop.f32.mrb[0].mxu0
      %v576 = vadd.f32 %v311, %v575
      %v577 = vpop.f32.mrb[0].mxu0
      %v578 = vadd.f32 %v315, %v577
      %v579 = vpop.f32.mrb[0].mxu0
      %v580 = vadd.f32 %v311, %v579
      %v581 = vpop.f32.mrb[0].mxu0
      %v582 = vadd.f32 %v315, %v581
      %583 = vmatprep.mubr.bf16.mxu0 0
      %584 = vmatmul.mubr.bf16.gmra.mrb[0].mxu0 %v382
      %v585 = vpop.f32.mrb[0].mxu0
      %v586 = vadd.f32 %v311, %v585
      %v587 = vpop.f32.mrb[0].mxu0
      %v588 = vadd.f32 %v315, %v587
      %v589 = vpop.f32.mrb[0].mxu0
      %v590 = vadd.f32 %v311, %v589
      %v591 = vpop.f32.mrb[0].mxu0
      %v592 = vadd.f32 %v315, %v591
      %593 = vmatprep.mubr.bf16.mxu0 0
      %594 = vmatmul.mubr.bf16.gmra.mrb[0].mxu0 %v385
      %v595 = vpop.f32.mrb[0].mxu0
      %v596 = vadd.f32 %v311, %v595
      %v597 = vpop.f32.mrb[0].mxu0
      %v598 = vadd.f32 %v315, %v597
      %v599 = vpop.f32.mrb[0].mxu0
      %v600 = vadd.f32 %v311, %v599
      %v601 = vpop.f32.mrb[0].mxu0
      %v602 = vadd.f32 %v315, %v601
      %603 = vmatprep.mubr.bf16.mxu0 0
      %604 = vmatmul.mubr.bf16.gmra.mrb[0].mxu0 %v388
      %v605 = vpop.f32.mrb[0].mxu0
      %v606 = vadd.f32 %v311, %v605
      %v607 = vpop.f32.mrb[0].mxu0
      %v608 = vadd.f32 %v315, %v607
      %v609 = vpop.f32.mrb[0].mxu0
      %v610 = vadd.f32 %v311, %v609
      %v611 = vpop.f32.mrb[0].mxu0
      %v612 = vadd.f32 %v315, %v611
      %613 = vmatprep.mubr.bf16.mxu0 0
      %614 = vmatmul.mubr.bf16.gmra.mrb[0].mxu0 %v391
      %v615 = vpop.f32.mrb[0].mxu0
      %v616 = vadd.f32 %v311, %v615
      %v617 = vpop.f32.mrb[0].mxu0
      %v618 = vadd.f32 %v315, %v617
      %v619 = vpop.f32.mrb[0].mxu0
      %v620 = vadd.f32 %v311, %v619
      %v621 = vpop.f32.mrb[0].mxu0
      %v622 = vadd.f32 %v315, %v621
      %623 = vmatprep.mubr.bf16.mxu0 0
      %624 = vmatmul.mubr.bf16.gmra.mrb[0].mxu0 %v394
      %v625 = vpop.f32.mrb[0].mxu0
      %v626 = vadd.f32 %v311, %v625
      %v627 = vpop.f32.mrb[0].mxu0
      %v628 = vadd.f32 %v315, %v627
      %v629 = vpop.f32.mrb[0].mxu0
      %v630 = vadd.f32 %v311, %v629
      %v631 = vpop.f32.mrb[0].mxu0
      %v632 = vadd.f32 %v315, %v631
      %633 = vmatprep.mubr.bf16.mxu0 0
      %634 = vmatmul.mubr.bf16.gmra.mrb[0].mxu0 %v397
      %v635 = vpop.f32.mrb[0].mxu0
      %v636 = vadd.f32 %v311, %v635
      %v637 = vpop.f32.mrb[0].mxu0
      %v638 = vadd.f32 %v315, %v637
      %v639 = vpop.f32.mrb[0].mxu0
      %v640 = vadd.f32 %v311, %v639
      %v641 = vpop.f32.mrb[0].mxu0
      %v642 = vadd.f32 %v315, %v641
      %643 = vmatprep.mubr.bf16.mxu0 0
      %644 = vmatmul.mubr.bf16.gmra.mrb[0].mxu0 %v400
      %v645 = vpop.f32.mrb[0].mxu0
      %v646 = vadd.f32 %v311, %v645
      %v647 = vpop.f32.mrb[0].mxu0
      %v648 = vadd.f32 %v315, %v647
      %v649 = vpop.f32.mrb[0].mxu0
      %v650 = vadd.f32 %v311, %v649
      %v651 = vpop.f32.mrb[0].mxu0
      %v652 = vadd.f32 %v315, %v651
      %653 = vmatprep.mubr.bf16.mxu0 0
      %654 = vmatmul.mubr.bf16.gmra.mrb[0].mxu0 %v403
      %v655 = vpop.f32.mrb[0].mxu0
      %v656 = vadd.f32 %v311, %v655
      %v657 = vpop.f32.mrb[0].mxu0
      %v658 = vadd.f32 %v315, %v657
      %v659 = vpop.f32.mrb[0].mxu0
      %v660 = vadd.f32 %v311, %v659
      %v661 = vpop.f32.mrb[0].mxu0
      %v662 = vadd.f32 %v315, %v661
      %663 = vmatprep.mubr.bf16.mxu0 0
      %664 = vmatmul.mubr.bf16.gmra.mrb[0].mxu0 %v406
      %v665 = vpop.f32.mrb[0].mxu0
      %v666 = vadd.f32 %v311, %v665
      %v667 = vpop.f32.mrb[0].mxu0
      %v668 = vadd.f32 %v315, %v667
      %v669 = vpop.f32.mrb[0].mxu0
      %v670 = vadd.f32 %v311, %v669
      %v671 = vpop.f32.mrb[0].mxu0
      %v672 = vadd.f32 %v315, %v671
      %673 = vmatprep.mubr.bf16.mxu0 0
      %674 = vmatmul.mubr.bf16.gmra.mrb[0].mxu0 %v409
      %v675 = vpop.f32.mrb[0].mxu0
      %v676 = vadd.f32 %v311, %v675
      %v677 = vpop.f32.mrb[0].mxu0
      %v678 = vadd.f32 %v315, %v677
      %v679 = vpop.f32.mrb[0].mxu0
      %v680 = vadd.f32 %v311, %v679
      %v681 = vpop.f32.mrb[0].mxu0
      %v682 = vadd.f32 %v315, %v681
      %683 = vdwg.mxu0
      %v684 = vmul.f32 %v446, 0.01
      %v685 = vmul.f32 %v448, 0.01
      %v686 = vmul.f32 %v450, 0.01
      %v687 = vmul.f32 %v452, 0.01
      %v688 = vmul.f32 %v456, 0.01
      %v689 = vmul.f32 %v458, 0.01
      %v690 = vmul.f32 %v460, 0.01
      %v691 = vmul.f32 %v462, 0.01
      %v692 = vmul.f32 %v466, 0.01
      %v693 = vmul.f32 %v468, 0.01
      %v694 = vmul.f32 %v470, 0.01
      %v695 = vmul.f32 %v472, 0.01
      %v696 = vmul.f32 %v476, 0.01
      %v697 = vmul.f32 %v478, 0.01
      %v698 = vmul.f32 %v480, 0.01
      %v699 = vmul.f32 %v482, 0.01
      %v700 = vmul.f32 %v486, 0.01
      %v701 = vmul.f32 %v488, 0.01
      %v702 = vmul.f32 %v490, 0.01
      %v703 = vmul.f32 %v492, 0.01
      %v704 = vmul.f32 %v496, 0.01
      %v705 = vmul.f32 %v498, 0.01
      %v706 = vmul.f32 %v500, 0.01
      %v707 = vmul.f32 %v502, 0.01
      %v708 = vmul.f32 %v506, 0.01
      %v709 = vmul.f32 %v508, 0.01
      %v710 = vmul.f32 %v510, 0.01
      %v711 = vmul.f32 %v512, 0.01
      %v712 = vmul.f32 %v516, 0.01
      %v713 = vmul.f32 %v518, 0.01
      %v714 = vmul.f32 %v520, 0.01
      %v715 = vmul.f32 %v522, 0.01
      %v716 = vmul.f32 %v526, 0.01
      %v717 = vmul.f32 %v528, 0.01
      %v718 = vmul.f32 %v530, 0.01
      %v719 = vmul.f32 %v532, 0.01
      %v720 = vmul.f32 %v536, 0.01
      %v721 = vmul.f32 %v538, 0.01
      %v722 = vmul.f32 %v540, 0.01
      %v723 = vmul.f32 %v542, 0.01
      %v724 = vmul.f32 %v546, 0.01
      %v725 = vmul.f32 %v548, 0.01
      %v726 = vmul.f32 %v550, 0.01
      %v727 = vmul.f32 %v552, 0.01
      %v728 = vmul.f32 %v556, 0.01
      %v729 = vmul.f32 %v558, 0.01
      %v730 = vmul.f32 %v560, 0.01
      %v731 = vmul.f32 %v562, 0.01
      %v732 = vmul.f32 %v566, 0.01
      %v733 = vmul.f32 %v568, 0.01
      %v734 = vmul.f32 %v570, 0.01
      %v735 = vmul.f32 %v572, 0.01
      %v736 = vmul.f32 %v576, 0.01
      %v737 = vmul.f32 %v578, 0.01
      %v738 = vmul.f32 %v580, 0.01
      %v739 = vmul.f32 %v582, 0.01
      %v740 = vmul.f32 %v586, 0.01
      %v741 = vmul.f32 %v588, 0.01
      %v742 = vmul.f32 %v590, 0.01
      %v743 = vmul.f32 %v592, 0.01
      %v744 = vmul.f32 %v596, 0.01
      %v745 = vmul.f32 %v598, 0.01
      %v746 = vmul.f32 %v600, 0.01
      %v747 = vmul.f32 %v602, 0.01
      %v748 = vmul.f32 %v606, 0.01
      %v749 = vmul.f32 %v608, 0.01
      %v750 = vmul.f32 %v610, 0.01
      %v751 = vmul.f32 %v612, 0.01
      %v752 = vmul.f32 %v616, 0.01
      %v753 = vmul.f32 %v618, 0.01
      %v754 = vmul.f32 %v620, 0.01
      %v755 = vmul.f32 %v622, 0.01
      %v756 = vmul.f32 %v626, 0.01
      %v757 = vmul.f32 %v628, 0.01
      %v758 = vmul.f32 %v630, 0.01
      %v759 = vmul.f32 %v632, 0.01
      %v760 = vmul.f32 %v636, 0.01
      %v761 = vmul.f32 %v638, 0.01
      %v762 = vmul.f32 %v640, 0.01
      %v763 = vmul.f32 %v642, 0.01
      %v764 = vmul.f32 %v646, 0.01
      %v765 = vmul.f32 %v648, 0.01
      %v766 = vmul.f32 %v650, 0.01
      %v767 = vmul.f32 %v652, 0.01
      %v768 = vmul.f32 %v656, 0.01
      %v769 = vmul.f32 %v658, 0.01
      %v770 = vmul.f32 %v660, 0.01
      %v771 = vmul.f32 %v662, 0.01
      %v772 = vmul.f32 %v666, 0.01
      %v773 = vmul.f32 %v668, 0.01
      %v774 = vmul.f32 %v670, 0.01
      %v775 = vmul.f32 %v672, 0.01
      %v776 = vmul.f32 %v676, 0.01
      %v777 = vmul.f32 %v678, 0.01
      %v778 = vmul.f32 %v680, 0.01
      %v779 = vmul.f32 %v682, 0.01
      %v780 = vmax.f32 %v446, %v684
      %v781 = vmax.f32 %v448, %v685
      %v782 = vmax.f32 %v450, %v686
      %v783 = vmax.f32 %v452, %v687
      %v784 = vmax.f32 %v456, %v688
      %v785 = vmax.f32 %v458, %v689
      %v786 = vmax.f32 %v460, %v690
      %v787 = vmax.f32 %v462, %v691
      %v788 = vmax.f32 %v466, %v692
      %v789 = vmax.f32 %v468, %v693
      %v790 = vmax.f32 %v470, %v694
      %v791 = vmax.f32 %v472, %v695
      %v792 = vmax.f32 %v476, %v696
      %v793 = vmax.f32 %v478, %v697
      %v794 = vmax.f32 %v480, %v698
      %v795 = vmax.f32 %v482, %v699
      %v796 = vmax.f32 %v486, %v700
      %v797 = vmax.f32 %v488, %v701
      %v798 = vmax.f32 %v490, %v702
      %v799 = vmax.f32 %v492, %v703
      %v800 = vmax.f32 %v496, %v704
      %v801 = vmax.f32 %v498, %v705
      %v802 = vmax.f32 %v500, %v706
      %v803 = vmax.f32 %v502, %v707
      %v804 = vmax.f32 %v506, %v708
      %v805 = vmax.f32 %v508, %v709
      %v806 = vmax.f32 %v510, %v710
      %v807 = vmax.f32 %v512, %v711
      %v808 = vmax.f32 %v516, %v712
      %v809 = vmax.f32 %v518, %v713
      %v810 = vmax.f32 %v520, %v714
      %v811 = vmax.f32 %v522, %v715
      %v812 = vmax.f32 %v526, %v716
      %v813 = vmax.f32 %v528, %v717
      %v814 = vmax.f32 %v530, %v718
      %v815 = vmax.f32 %v532, %v719
      %v816 = vmax.f32 %v536, %v720
      %v817 = vmax.f32 %v538, %v721
      %v818 = vmax.f32 %v540, %v722
      %v819 = vmax.f32 %v542, %v723
      %v820 = vmax.f32 %v546, %v724
      %v821 = vmax.f32 %v548, %v725
      %v822 = vmax.f32 %v550, %v726
      %v823 = vmax.f32 %v552, %v727
      %v824 = vmax.f32 %v556, %v728
      %v825 = vmax.f32 %v558, %v729
      %v826 = vmax.f32 %v560, %v730
      %v827 = vmax.f32 %v562, %v731
      %v828 = vmax.f32 %v566, %v732
      %v829 = vmax.f32 %v568, %v733
      %v830 = vmax.f32 %v570, %v734
      %v831 = vmax.f32 %v572, %v735
      %v832 = vmax.f32 %v576, %v736
      %v833 = vmax.f32 %v578, %v737
      %v834 = vmax.f32 %v580, %v738
      %v835 = vmax.f32 %v582, %v739
      %v836 = vmax.f32 %v586, %v740
      %v837 = vmax.f32 %v588, %v741
      %v838 = vmax.f32 %v590, %v742
      %v839 = vmax.f32 %v592, %v743
      %v840 = vmax.f32 %v596, %v744
      %v841 = vmax.f32 %v598, %v745
      %v842 = vmax.f32 %v600, %v746
      %v843 = vmax.f32 %v602, %v747
      %v844 = vmax.f32 %v606, %v748
      %v845 = vmax.f32 %v608, %v749
      %v846 = vmax.f32 %v610, %v750
      %v847 = vmax.f32 %v612, %v751
      %v848 = vmax.f32 %v616, %v752
      %v849 = vmax.f32 %v618, %v753
      %v850 = vmax.f32 %v620, %v754
      %v851 = vmax.f32 %v622, %v755
      %v852 = vmax.f32 %v626, %v756
      %v853 = vmax.f32 %v628, %v757
      %v854 = vmax.f32 %v630, %v758
      %v855 = vmax.f32 %v632, %v759
      %v856 = vmax.f32 %v636, %v760
      %v857 = vmax.f32 %v638, %v761
      %v858 = vmax.f32 %v640, %v762
      %v859 = vmax.f32 %v642, %v763
      %v860 = vmax.f32 %v646, %v764
      %v861 = vmax.f32 %v648, %v765
      %v862 = vmax.f32 %v650, %v766
      %v863 = vmax.f32 %v652, %v767
      %v864 = vmax.f32 %v656, %v768
      %v865 = vmax.f32 %v658, %v769
      %v866 = vmax.f32 %v660, %v770
      %v867 = vmax.f32 %v662, %v771
      %v868 = vmax.f32 %v666, %v772
      %v869 = vmax.f32 %v668, %v773
      %v870 = vmax.f32 %v670, %v774
      %v871 = vmax.f32 %v672, %v775
      %v872 = vmax.f32 %v676, %v776
      %v873 = vmax.f32 %v678, %v777
      %v874 = vmax.f32 %v680, %v778
      %v875 = vmax.f32 %v682, %v779
      %v876 = vld [vmem:[%s3] sm:$0x3]
      %v878 = vlaneseq
      %v879 = vshrl.u32 %v878, 7
      %v880 = vsub.s32 0, %v879
      %v881 = vrot.slane %v876, %v880
      %v882 = vlaneseq
      %v883 = vshrl.u32 %v882, 7
      %v884 = vsub.s32 1, %v883
      %v885 = vrot.slane %v876, %v884
      %v888 = vmul.f32 %v780, %v881
      %v889 = vmul.f32 %v781, %v885
      %v890 = vmul.f32 %v782, %v881
      %v891 = vmul.f32 %v783, %v885
      %v892 = vmul.f32 %v784, %v881
      %v893 = vmul.f32 %v785, %v885
      %v894 = vmul.f32 %v786, %v881
      %v895 = vmul.f32 %v787, %v885
      %v896 = vmul.f32 %v788, %v881
      %v897 = vmul.f32 %v789, %v885
      %v898 = vmul.f32 %v790, %v881
      %v899 = vmul.f32 %v791, %v885
      %v900 = vmul.f32 %v792, %v881
      %v901 = vmul.f32 %v793, %v885
      %v902 = vmul.f32 %v794, %v881
      %v903 = vmul.f32 %v795, %v885
      %v904 = vmul.f32 %v796, %v881
      %v905 = vmul.f32 %v797, %v885
      %v906 = vmul.f32 %v798, %v881
      %v907 = vmul.f32 %v799, %v885
      %v908 = vmul.f32 %v800, %v881
      %v909 = vmul.f32 %v801, %v885
      %v910 = vmul.f32 %v802, %v881
      %v911 = vmul.f32 %v803, %v885
      %v912 = vmul.f32 %v804, %v881
      %v913 = vmul.f32 %v805, %v885
      %v914 = vmul.f32 %v806, %v881
      %v915 = vmul.f32 %v807, %v885
      %v916 = vmul.f32 %v808, %v881
      %v917 = vmul.f32 %v809, %v885
      %v918 = vmul.f32 %v810, %v881
      %v919 = vmul.f32 %v811, %v885
      %v920 = vmul.f32 %v812, %v881
      %v921 = vmul.f32 %v813, %v885
      %v922 = vmul.f32 %v814, %v881
      %v923 = vmul.f32 %v815, %v885
      %v924 = vmul.f32 %v816, %v881
      %v925 = vmul.f32 %v817, %v885
      %v926 = vmul.f32 %v818, %v881
      %v927 = vmul.f32 %v819, %v885
      %v928 = vmul.f32 %v820, %v881
      %v929 = vmul.f32 %v821, %v885
      %v930 = vmul.f32 %v822, %v881
      %v931 = vmul.f32 %v823, %v885
      %v932 = vmul.f32 %v824, %v881
      %v933 = vmul.f32 %v825, %v885
      %v934 = vmul.f32 %v826, %v881
      %v935 = vmul.f32 %v827, %v885
      %v936 = vmul.f32 %v828, %v881
      %v937 = vmul.f32 %v829, %v885
      %v938 = vmul.f32 %v830, %v881
      %v939 = vmul.f32 %v831, %v885
      %v940 = vmul.f32 %v832, %v881
      %v941 = vmul.f32 %v833, %v885
      %v942 = vmul.f32 %v834, %v881
      %v943 = vmul.f32 %v835, %v885
      %v944 = vmul.f32 %v836, %v881
      %v945 = vmul.f32 %v837, %v885
      %v946 = vmul.f32 %v838, %v881
      %v947 = vmul.f32 %v839, %v885
      %v948 = vmul.f32 %v840, %v881
      %v949 = vmul.f32 %v841, %v885
      %v950 = vmul.f32 %v842, %v881
      %v951 = vmul.f32 %v843, %v885
      %v952 = vmul.f32 %v844, %v881
      %v953 = vmul.f32 %v845, %v885
      %v954 = vmul.f32 %v846, %v881
      %v955 = vmul.f32 %v847, %v885
      %v956 = vmul.f32 %v848, %v881
      %v957 = vmul.f32 %v849, %v885
      %v958 = vmul.f32 %v850, %v881
      %v959 = vmul.f32 %v851, %v885
      %v960 = vmul.f32 %v852, %v881
      %v961 = vmul.f32 %v853, %v885
      %v962 = vmul.f32 %v854, %v881
      %v963 = vmul.f32 %v855, %v885
      %v964 = vmul.f32 %v856, %v881
      %v965 = vmul.f32 %v857, %v885
      %v966 = vmul.f32 %v858, %v881
      %v967 = vmul.f32 %v859, %v885
      %v968 = vmul.f32 %v860, %v881
      %v969 = vmul.f32 %v861, %v885
      %v970 = vmul.f32 %v862, %v881
      %v971 = vmul.f32 %v863, %v885
      %v972 = vmul.f32 %v864, %v881
      %v973 = vmul.f32 %v865, %v885
      %v974 = vmul.f32 %v866, %v881
      %v975 = vmul.f32 %v867, %v885
      %v976 = vmul.f32 %v868, %v881
      %v977 = vmul.f32 %v869, %v885
      %v978 = vmul.f32 %v870, %v881
      %v979 = vmul.f32 %v871, %v885
      %v980 = vmul.f32 %v872, %v881
      %v981 = vmul.f32 %v873, %v885
      %v982 = vmul.f32 %v874, %v881
      %v983 = vmul.f32 %v875, %v885
      %v984 = vadd.f32 %v888, %v889
      %985 = vadd.xlane.f32.xlu0 %v984
      %v986 = vpop.xlane.xlu0 %985
      %v987 = vadd.f32 %v890, %v891
      %988 = vadd.xlane.f32.xlu0 %v987
      %v989 = vpop.xlane.xlu0 %988
      %v990 = vadd.f32 %v892, %v893
      %991 = vadd.xlane.f32.xlu0 %v990
      %v992 = vpop.xlane.xlu0 %991
      %v993 = vadd.f32 %v894, %v895
      %994 = vadd.xlane.f32.xlu0 %v993
      %v995 = vpop.xlane.xlu0 %994
      %v996 = vadd.f32 %v896, %v897
      %997 = vadd.xlane.f32.xlu0 %v996
      %v998 = vpop.xlane.xlu0 %997
      %v999 = vadd.f32 %v898, %v899
      %1000 = vadd.xlane.f32.xlu0 %v999
      %v1001 = vpop.xlane.xlu0 %1000
      %v1002 = vadd.f32 %v900, %v901
      %1003 = vadd.xlane.f32.xlu0 %v1002
      %v1004 = vpop.xlane.xlu0 %1003
      %v1005 = vadd.f32 %v902, %v903
      %1006 = vadd.xlane.f32.xlu0 %v1005
      %v1007 = vpop.xlane.xlu0 %1006
      %v1008 = vadd.f32 %v904, %v905
      %1009 = vadd.xlane.f32.xlu0 %v1008
      %v1010 = vpop.xlane.xlu0 %1009
      %v1011 = vadd.f32 %v906, %v907
      %1012 = vadd.xlane.f32.xlu0 %v1011
      %v1013 = vpop.xlane.xlu0 %1012
      %v1014 = vadd.f32 %v908, %v909
      %1015 = vadd.xlane.f32.xlu0 %v1014
      %v1016 = vpop.xlane.xlu0 %1015
      %v1017 = vadd.f32 %v910, %v911
      %1018 = vadd.xlane.f32.xlu0 %v1017
      %v1019 = vpop.xlane.xlu0 %1018
      %v1020 = vadd.f32 %v912, %v913
      %1021 = vadd.xlane.f32.xlu0 %v1020
      %v1022 = vpop.xlane.xlu0 %1021
      %v1023 = vadd.f32 %v914, %v915
      %1024 = vadd.xlane.f32.xlu0 %v1023
      %v1025 = vpop.xlane.xlu0 %1024
      %v1026 = vadd.f32 %v916, %v917
      %1027 = vadd.xlane.f32.xlu0 %v1026
      %v1028 = vpop.xlane.xlu0 %1027
      %v1029 = vadd.f32 %v918, %v919
      %1030 = vadd.xlane.f32.xlu0 %v1029
      %v1031 = vpop.xlane.xlu0 %1030
      %v1032 = vadd.f32 %v920, %v921
      %1033 = vadd.xlane.f32.xlu0 %v1032
      %v1034 = vpop.xlane.xlu0 %1033
      %v1035 = vadd.f32 %v922, %v923
      %1036 = vadd.xlane.f32.xlu0 %v1035
      %v1037 = vpop.xlane.xlu0 %1036
      %v1038 = vadd.f32 %v924, %v925
      %1039 = vadd.xlane.f32.xlu0 %v1038
      %v1040 = vpop.xlane.xlu0 %1039
      %v1041 = vadd.f32 %v926, %v927
      %1042 = vadd.xlane.f32.xlu0 %v1041
      %v1043 = vpop.xlane.xlu0 %1042
      %v1044 = vadd.f32 %v928, %v929
      %1045 = vadd.xlane.f32.xlu0 %v1044
      %v1046 = vpop.xlane.xlu0 %1045
      %v1047 = vadd.f32 %v930, %v931
      %1048 = vadd.xlane.f32.xlu0 %v1047
      %v1049 = vpop.xlane.xlu0 %1048
      %v1050 = vadd.f32 %v932, %v933
      %1051 = vadd.xlane.f32.xlu0 %v1050
      %v1052 = vpop.xlane.xlu0 %1051
      %v1053 = vadd.f32 %v934, %v935
      %1054 = vadd.xlane.f32.xlu0 %v1053
      %v1055 = vpop.xlane.xlu0 %1054
      %v1056 = vadd.f32 %v936, %v937
      %1057 = vadd.xlane.f32.xlu0 %v1056
      %v1058 = vpop.xlane.xlu0 %1057
      %v1059 = vadd.f32 %v938, %v939
      %1060 = vadd.xlane.f32.xlu0 %v1059
      %v1061 = vpop.xlane.xlu0 %1060
      %v1062 = vadd.f32 %v940, %v941
      %1063 = vadd.xlane.f32.xlu0 %v1062
      %v1064 = vpop.xlane.xlu0 %1063
      %v1065 = vadd.f32 %v942, %v943
      %1066 = vadd.xlane.f32.xlu0 %v1065
      %v1067 = vpop.xlane.xlu0 %1066
      %v1068 = vadd.f32 %v944, %v945
      %1069 = vadd.xlane.f32.xlu0 %v1068
      %v1070 = vpop.xlane.xlu0 %1069
      %v1071 = vadd.f32 %v946, %v947
      %1072 = vadd.xlane.f32.xlu0 %v1071
      %v1073 = vpop.xlane.xlu0 %1072
      %v1074 = vadd.f32 %v948, %v949
      %1075 = vadd.xlane.f32.xlu0 %v1074
      %v1076 = vpop.xlane.xlu0 %1075
      %v1077 = vadd.f32 %v950, %v951
      %1078 = vadd.xlane.f32.xlu0 %v1077
      %v1079 = vpop.xlane.xlu0 %1078
      %v1080 = vadd.f32 %v952, %v953
      %1081 = vadd.xlane.f32.xlu0 %v1080
      %v1082 = vpop.xlane.xlu0 %1081
      %v1083 = vadd.f32 %v954, %v955
      %1084 = vadd.xlane.f32.xlu0 %v1083
      %v1085 = vpop.xlane.xlu0 %1084
      %v1086 = vadd.f32 %v956, %v957
      %1087 = vadd.xlane.f32.xlu0 %v1086
      %v1088 = vpop.xlane.xlu0 %1087
      %v1089 = vadd.f32 %v958, %v959
      %1090 = vadd.xlane.f32.xlu0 %v1089
      %v1091 = vpop.xlane.xlu0 %1090
      %v1092 = vadd.f32 %v960, %v961
      %1093 = vadd.xlane.f32.xlu0 %v1092
      %v1094 = vpop.xlane.xlu0 %1093
      %v1095 = vadd.f32 %v962, %v963
      %1096 = vadd.xlane.f32.xlu0 %v1095
      %v1097 = vpop.xlane.xlu0 %1096
      %v1098 = vadd.f32 %v964, %v965
      %1099 = vadd.xlane.f32.xlu0 %v1098
      %v1100 = vpop.xlane.xlu0 %1099
      %v1101 = vadd.f32 %v966, %v967
      %1102 = vadd.xlane.f32.xlu0 %v1101
      %v1103 = vpop.xlane.xlu0 %1102
      %v1104 = vadd.f32 %v968, %v969
      %1105 = vadd.xlane.f32.xlu0 %v1104
      %v1106 = vpop.xlane.xlu0 %1105
      %v1107 = vadd.f32 %v970, %v971
      %1108 = vadd.xlane.f32.xlu0 %v1107
      %v1109 = vpop.xlane.xlu0 %1108
      %v1110 = vadd.f32 %v972, %v973
      %1111 = vadd.xlane.f32.xlu0 %v1110
      %v1112 = vpop.xlane.xlu0 %1111
      %v1113 = vadd.f32 %v974, %v975
      %1114 = vadd.xlane.f32.xlu0 %v1113
      %v1115 = vpop.xlane.xlu0 %1114
      %v1116 = vadd.f32 %v976, %v977
      %1117 = vadd.xlane.f32.xlu0 %v1116
      %v1118 = vpop.xlane.xlu0 %1117
      %v1119 = vadd.f32 %v978, %v979
      %1120 = vadd.xlane.f32.xlu0 %v1119
      %v1121 = vpop.xlane.xlu0 %1120
      %v1122 = vadd.f32 %v980, %v981
      %1123 = vadd.xlane.f32.xlu0 %v1122
      %v1124 = vpop.xlane.xlu0 %1123
      %v1125 = vadd.f32 %v982, %v983
      %1126 = vadd.xlane.f32.xlu0 %v1125
      %v1127 = vpop.xlane.xlu0 %1126
      %v1128 = vadd.f32 %v986, 0.0
      %v1129 = vadd.f32 %v989, 0.0
      %v1130 = vadd.f32 %v992, 0.0
      %v1131 = vadd.f32 %v995, 0.0
      %v1132 = vadd.f32 %v998, 0.0
      %v1133 = vadd.f32 %v1001, 0.0
      %v1134 = vadd.f32 %v1004, 0.0
      %v1135 = vadd.f32 %v1007, 0.0
      %v1136 = vadd.f32 %v1010, 0.0
      %v1137 = vadd.f32 %v1013, 0.0
      %v1138 = vadd.f32 %v1016, 0.0
      %v1139 = vadd.f32 %v1019, 0.0
      %v1140 = vadd.f32 %v1022, 0.0
      %v1141 = vadd.f32 %v1025, 0.0
      %v1142 = vadd.f32 %v1028, 0.0
      %v1143 = vadd.f32 %v1031, 0.0
      %v1144 = vadd.f32 %v1034, 0.0
      %v1145 = vadd.f32 %v1037, 0.0
      %v1146 = vadd.f32 %v1040, 0.0
      %v1147 = vadd.f32 %v1043, 0.0
      %v1148 = vadd.f32 %v1046, 0.0
      %v1149 = vadd.f32 %v1049, 0.0
      %v1150 = vadd.f32 %v1052, 0.0
      %v1151 = vadd.f32 %v1055, 0.0
      %v1152 = vadd.f32 %v1058, 0.0
      %v1153 = vadd.f32 %v1061, 0.0
      %v1154 = vadd.f32 %v1064, 0.0
      %v1155 = vadd.f32 %v1067, 0.0
      %v1156 = vadd.f32 %v1070, 0.0
      %v1157 = vadd.f32 %v1073, 0.0
      %v1158 = vadd.f32 %v1076, 0.0
      %v1159 = vadd.f32 %v1079, 0.0
      %v1160 = vadd.f32 %v1082, 0.0
      %v1161 = vadd.f32 %v1085, 0.0
      %v1162 = vadd.f32 %v1088, 0.0
      %v1163 = vadd.f32 %v1091, 0.0
      %v1164 = vadd.f32 %v1094, 0.0
      %v1165 = vadd.f32 %v1097, 0.0
      %v1166 = vadd.f32 %v1100, 0.0
      %v1167 = vadd.f32 %v1103, 0.0
      %v1168 = vadd.f32 %v1106, 0.0
      %v1169 = vadd.f32 %v1109, 0.0
      %v1170 = vadd.f32 %v1112, 0.0
      %v1171 = vadd.f32 %v1115, 0.0
      %v1172 = vadd.f32 %v1118, 0.0
      %v1173 = vadd.f32 %v1121, 0.0
      %v1174 = vadd.f32 %v1124, 0.0
      %v1175 = vadd.f32 %v1127, 0.0
      %v1176 = vld [vmem:[%s1 + $0x8] sm:$0xff]
      %v1177 = vld [vmem:[%s1 + $0x18] sm:$0xff]
      %v1178 = vld [vmem:[%s1 + $0x28] sm:$0xff]
      %v1179 = vld [vmem:[%s1 + $0x38] sm:$0xff]
      %v1180 = vld [vmem:[%s2 + $0x2] sm:$0x3]
      %v1182 = vlaneseq
      %v1183 = vshrl.u32 %v1182, 7
      %v1184 = vsub.s32 0, %v1183
      %v1185 = vrot.slane %v1180, %v1184
      %v1186 = vlaneseq
      %v1187 = vshrl.u32 %v1186, 7
      %v1188 = vsub.s32 1, %v1187
      %v1189 = vrot.slane %v1180, %v1188
      %v1196 = vunpack.c.l.b16 %v1176
      %v1197 = vunpack.c.h.b16 %v1176
      %v1198 = vunpack.c.l.b16 %v1177
      %v1199 = vunpack.c.h.b16 %v1177
      %v1200 = vunpack.c.l.b16 %v1178
      %v1201 = vunpack.c.h.b16 %v1178
      %v1202 = vunpack.c.l.b16 %v1179
      %v1203 = vunpack.c.h.b16 %v1179
      %v1204 = vpack.c.b16 %v1198, %v1196
      %v1205 = vpack.c.b16 %v1199, %v1197
      %v1206 = vpack.c.b16 %v1202, %v1200
      %v1207 = vpack.c.b16 %v1203, %v1201
      %1212 = vmatprep.subr.bf16.mxu0 %v1205
      %1213 = vmatpush1.bf16.msra.mxu0 %v1204
      %1214 = vmatprep.subr.bf16.mxu0 %v1207
      %1215 = vmatpush1.bf16.msra.mxu0 %v1206
      %1216 = vmatprep.subr.bf16.mxu0 0
      %1217 = vmatpush1.bf16.msra.mxu0 0
      %1218 = vmatprep.subr.bf16.mxu0 0
      %1219 = vmatpush1.bf16.msra.mxu0 0
      %1220 = vmatprep.subr.bf16.mxu0 0
      %1221 = vmatpush1.bf16.msra.mxu0 0
      %1222 = vmatprep.subr.bf16.mxu0 0
      %1223 = vmatpush1.bf16.msra.mxu0 0
      %1224 = vmatprep.subr.bf16.mxu0 0
      %1225 = vmatpush1.bf16.msra.mxu0 0
      %1226 = vmatprep.subr.bf16.mxu0 0
      %1227 = vmatpush1.bf16.msra.mxu0 0
      %1228 = vmatprep.subr.bf16.mxu0 0
      %1229 = vmatpush1.bf16.msra.mxu0 0
      %1230 = vmatprep.subr.bf16.mxu0 0
      %1231 = vmatpush1.bf16.msra.mxu0 0
      %1232 = vmatprep.subr.bf16.mxu0 0
      %1233 = vmatpush1.bf16.msra.mxu0 0
      %1234 = vmatprep.subr.bf16.mxu0 0
      %1235 = vmatpush1.bf16.msra.mxu0 0
      %1236 = vmatprep.subr.bf16.mxu0 0
      %1237 = vmatpush1.bf16.msra.mxu0 0
      %1238 = vmatprep.subr.bf16.mxu0 0
      %1239 = vmatpush1.bf16.msra.mxu0 0
      %1240 = vmatprep.subr.bf16.mxu0 0
      %1241 = vmatpush1.bf16.msra.mxu0 0
      %1242 = vmatprep.subr.bf16.mxu0 0
      %1243 = vmatpush1.bf16.msra.mxu0 0
      %1244 = vmatprep.mubr.bf16.mxu0 0
      %1245 = vmatmul.mubr.bf16.gmra.mrb[0].mxu0 %v340
      %v1246 = vpop.f32.mrb[0].mxu0
      %v1247 = vadd.f32 %v1185, %v1246
      %v1248 = vpop.f32.mrb[0].mxu0
      %v1249 = vadd.f32 %v1189, %v1248
      %v1250 = vpop.f32.mrb[0].mxu0
      %v1251 = vadd.f32 %v1185, %v1250
      %v1252 = vpop.f32.mrb[0].mxu0
      %v1253 = vadd.f32 %v1189, %v1252
      %1254 = vmatprep.mubr.bf16.mxu0 0
      %1255 = vmatmul.mubr.bf16.gmra.mrb[0].mxu0 %v343
      %v1256 = vpop.f32.mrb[0].mxu0
      %v1257 = vadd.f32 %v1185, %v1256
      %v1258 = vpop.f32.mrb[0].mxu0
      %v1259 = vadd.f32 %v1189, %v1258
      %v1260 = vpop.f32.mrb[0].mxu0
      %v1261 = vadd.f32 %v1185, %v1260
      %v1262 = vpop.f32.mrb[0].mxu0
      %v1263 = vadd.f32 %v1189, %v1262
      %1264 = vmatprep.mubr.bf16.mxu0 0
      %1265 = vmatmul.mubr.bf16.gmra.mrb[0].mxu0 %v346
      %v1266 = vpop.f32.mrb[0].mxu0
      %v1267 = vadd.f32 %v1185, %v1266
      %v1268 = vpop.f32.mrb[0].mxu0
      %v1269 = vadd.f32 %v1189, %v1268
      %v1270 = vpop.f32.mrb[0].mxu0
      %v1271 = vadd.f32 %v1185, %v1270
      %v1272 = vpop.f32.mrb[0].mxu0
      %v1273 = vadd.f32 %v1189, %v1272
      %1274 = vmatprep.mubr.bf16.mxu0 0
      %1275 = vmatmul.mubr.bf16.gmra.mrb[0].mxu0 %v349
      %v1276 = vpop.f32.mrb[0].mxu0
      %v1277 = vadd.f32 %v1185, %v1276
      %v1278 = vpop.f32.mrb[0].mxu0
      %v1279 = vadd.f32 %v1189, %v1278
      %v1280 = vpop.f32.mrb[0].mxu0
      %v1281 = vadd.f32 %v1185, %v1280
      %v1282 = vpop.f32.mrb[0].mxu0
      %v1283 = vadd.f32 %v1189, %v1282
      %1284 = vmatprep.mubr.bf16.mxu0 0
      %1285 = vmatmul.mubr.bf16.gmra.mrb[0].mxu0 %v352
      %v1286 = vpop.f32.mrb[0].mxu0
      %v1287 = vadd.f32 %v1185, %v1286
      %v1288 = vpop.f32.mrb[0].mxu0
      %v1289 = vadd.f32 %v1189, %v1288
      %v1290 = vpop.f32.mrb[0].mxu0
      %v1291 = vadd.f32 %v1185, %v1290
      %v1292 = vpop.f32.mrb[0].mxu0
      %v1293 = vadd.f32 %v1189, %v1292
      %1294 = vmatprep.mubr.bf16.mxu0 0
      %1295 = vmatmul.mubr.bf16.gmra.mrb[0].mxu0 %v355
      %v1296 = vpop.f32.mrb[0].mxu0
      %v1297 = vadd.f32 %v1185, %v1296
      %v1298 = vpop.f32.mrb[0].mxu0
      %v1299 = vadd.f32 %v1189, %v1298
      %v1300 = vpop.f32.mrb[0].mxu0
      %v1301 = vadd.f32 %v1185, %v1300
      %v1302 = vpop.f32.mrb[0].mxu0
      %v1303 = vadd.f32 %v1189, %v1302
      %1304 = vmatprep.mubr.bf16.mxu0 0
      %1305 = vmatmul.mubr.bf16.gmra.mrb[0].mxu0 %v358
      %v1306 = vpop.f32.mrb[0].mxu0
      %v1307 = vadd.f32 %v1185, %v1306
      %v1308 = vpop.f32.mrb[0].mxu0
      %v1309 = vadd.f32 %v1189, %v1308
      %v1310 = vpop.f32.mrb[0].mxu0
      %v1311 = vadd.f32 %v1185, %v1310
      %v1312 = vpop.f32.mrb[0].mxu0
      %v1313 = vadd.f32 %v1189, %v1312
      %1314 = vmatprep.mubr.bf16.mxu0 0
      %1315 = vmatmul.mubr.bf16.gmra.mrb[0].mxu0 %v361
      %v1316 = vpop.f32.mrb[0].mxu0
      %v1317 = vadd.f32 %v1185, %v1316
      %v1318 = vpop.f32.mrb[0].mxu0
      %v1319 = vadd.f32 %v1189, %v1318
      %v1320 = vpop.f32.mrb[0].mxu0
      %v1321 = vadd.f32 %v1185, %v1320
      %v1322 = vpop.f32.mrb[0].mxu0
      %v1323 = vadd.f32 %v1189, %v1322
      %1324 = vmatprep.mubr.bf16.mxu0 0
      %1325 = vmatmul.mubr.bf16.gmra.mrb[0].mxu0 %v364
      %v1326 = vpop.f32.mrb[0].mxu0
      %v1327 = vadd.f32 %v1185, %v1326
      %v1328 = vpop.f32.mrb[0].mxu0
      %v1329 = vadd.f32 %v1189, %v1328
      %v1330 = vpop.f32.mrb[0].mxu0
      %v1331 = vadd.f32 %v1185, %v1330
      %v1332 = vpop.f32.mrb[0].mxu0
      %v1333 = vadd.f32 %v1189, %v1332
      %1334 = vmatprep.mubr.bf16.mxu0 0
      %1335 = vmatmul.mubr.bf16.gmra.mrb[0].mxu0 %v367
      %v1336 = vpop.f32.mrb[0].mxu0
      %v1337 = vadd.f32 %v1185, %v1336
      %v1338 = vpop.f32.mrb[0].mxu0
      %v1339 = vadd.f32 %v1189, %v1338
      %v1340 = vpop.f32.mrb[0].mxu0
      %v1341 = vadd.f32 %v1185, %v1340
      %v1342 = vpop.f32.mrb[0].mxu0
      %v1343 = vadd.f32 %v1189, %v1342
      %1344 = vmatprep.mubr.bf16.mxu0 0
      %1345 = vmatmul.mubr.bf16.gmra.mrb[0].mxu0 %v370
      %v1346 = vpop.f32.mrb[0].mxu0
      %v1347 = vadd.f32 %v1185, %v1346
      %v1348 = vpop.f32.mrb[0].mxu0
      %v1349 = vadd.f32 %v1189, %v1348
      %v1350 = vpop.f32.mrb[0].mxu0
      %v1351 = vadd.f32 %v1185, %v1350
      %v1352 = vpop.f32.mrb[0].mxu0
      %v1353 = vadd.f32 %v1189, %v1352
      %1354 = vmatprep.mubr.bf16.mxu0 0
      %1355 = vmatmul.mubr.bf16.gmra.mrb[0].mxu0 %v373
      %v1356 = vpop.f32.mrb[0].mxu0
      %v1357 = vadd.f32 %v1185, %v1356
      %v1358 = vpop.f32.mrb[0].mxu0
      %v1359 = vadd.f32 %v1189, %v1358
      %v1360 = vpop.f32.mrb[0].mxu0
      %v1361 = vadd.f32 %v1185, %v1360
      %v1362 = vpop.f32.mrb[0].mxu0
      %v1363 = vadd.f32 %v1189, %v1362
      %1364 = vmatprep.mubr.bf16.mxu0 0
      %1365 = vmatmul.mubr.bf16.gmra.mrb[0].mxu0 %v376
      %v1366 = vpop.f32.mrb[0].mxu0
      %v1367 = vadd.f32 %v1185, %v1366
      %v1368 = vpop.f32.mrb[0].mxu0
      %v1369 = vadd.f32 %v1189, %v1368
      %v1370 = vpop.f32.mrb[0].mxu0
      %v1371 = vadd.f32 %v1185, %v1370
      %v1372 = vpop.f32.mrb[0].mxu0
      %v1373 = vadd.f32 %v1189, %v1372
      %1374 = vmatprep.mubr.bf16.mxu0 0
      %1375 = vmatmul.mubr.bf16.gmra.mrb[0].mxu0 %v379
      %v1376 = vpop.f32.mrb[0].mxu0
      %v1377 = vadd.f32 %v1185, %v1376
      %v1378 = vpop.f32.mrb[0].mxu0
      %v1379 = vadd.f32 %v1189, %v1378
      %v1380 = vpop.f32.mrb[0].mxu0
      %v1381 = vadd.f32 %v1185, %v1380
      %v1382 = vpop.f32.mrb[0].mxu0
      %v1383 = vadd.f32 %v1189, %v1382
      %1384 = vmatprep.mubr.bf16.mxu0 0
      %1385 = vmatmul.mubr.bf16.gmra.mrb[0].mxu0 %v382
      %v1386 = vpop.f32.mrb[0].mxu0
      %v1387 = vadd.f32 %v1185, %v1386
      %v1388 = vpop.f32.mrb[0].mxu0
      %v1389 = vadd.f32 %v1189, %v1388
      %v1390 = vpop.f32.mrb[0].mxu0
      %v1391 = vadd.f32 %v1185, %v1390
      %v1392 = vpop.f32.mrb[0].mxu0
      %v1393 = vadd.f32 %v1189, %v1392
      %1394 = vmatprep.mubr.bf16.mxu0 0
      %1395 = vmatmul.mubr.bf16.gmra.mrb[0].mxu0 %v385
      %v1396 = vpop.f32.mrb[0].mxu0
      %v1397 = vadd.f32 %v1185, %v1396
      %v1398 = vpop.f32.mrb[0].mxu0
      %v1399 = vadd.f32 %v1189, %v1398
      %v1400 = vpop.f32.mrb[0].mxu0
      %v1401 = vadd.f32 %v1185, %v1400
      %v1402 = vpop.f32.mrb[0].mxu0
      %v1403 = vadd.f32 %v1189, %v1402
      %1404 = vmatprep.mubr.bf16.mxu0 0
      %1405 = vmatmul.mubr.bf16.gmra.mrb[0].mxu0 %v388
      %v1406 = vpop.f32.mrb[0].mxu0
      %v1407 = vadd.f32 %v1185, %v1406
      %v1408 = vpop.f32.mrb[0].mxu0
      %v1409 = vadd.f32 %v1189, %v1408
      %v1410 = vpop.f32.mrb[0].mxu0
      %v1411 = vadd.f32 %v1185, %v1410
      %v1412 = vpop.f32.mrb[0].mxu0
      %v1413 = vadd.f32 %v1189, %v1412
      %1414 = vmatprep.mubr.bf16.mxu0 0
      %1415 = vmatmul.mubr.bf16.gmra.mrb[0].mxu0 %v391
      %v1416 = vpop.f32.mrb[0].mxu0
      %v1417 = vadd.f32 %v1185, %v1416
      %v1418 = vpop.f32.mrb[0].mxu0
      %v1419 = vadd.f32 %v1189, %v1418
      %v1420 = vpop.f32.mrb[0].mxu0
      %v1421 = vadd.f32 %v1185, %v1420
      %v1422 = vpop.f32.mrb[0].mxu0
      %v1423 = vadd.f32 %v1189, %v1422
      %1424 = vmatprep.mubr.bf16.mxu0 0
      %1425 = vmatmul.mubr.bf16.gmra.mrb[0].mxu0 %v394
      %v1426 = vpop.f32.mrb[0].mxu0
      %v1427 = vadd.f32 %v1185, %v1426
      %v1428 = vpop.f32.mrb[0].mxu0
      %v1429 = vadd.f32 %v1189, %v1428
      %v1430 = vpop.f32.mrb[0].mxu0
      %v1431 = vadd.f32 %v1185, %v1430
      %v1432 = vpop.f32.mrb[0].mxu0
      %v1433 = vadd.f32 %v1189, %v1432
      %1434 = vmatprep.mubr.bf16.mxu0 0
      %1435 = vmatmul.mubr.bf16.gmra.mrb[0].mxu0 %v397
      %v1436 = vpop.f32.mrb[0].mxu0
      %v1437 = vadd.f32 %v1185, %v1436
      %v1438 = vpop.f32.mrb[0].mxu0
      %v1439 = vadd.f32 %v1189, %v1438
      %v1440 = vpop.f32.mrb[0].mxu0
      %v1441 = vadd.f32 %v1185, %v1440
      %v1442 = vpop.f32.mrb[0].mxu0
      %v1443 = vadd.f32 %v1189, %v1442
      %1444 = vmatprep.mubr.bf16.mxu0 0
      %1445 = vmatmul.mubr.bf16.gmra.mrb[0].mxu0 %v400
      %v1446 = vpop.f32.mrb[0].mxu0
      %v1447 = vadd.f32 %v1185, %v1446
      %v1448 = vpop.f32.mrb[0].mxu0
      %v1449 = vadd.f32 %v1189, %v1448
      %v1450 = vpop.f32.mrb[0].mxu0
      %v1451 = vadd.f32 %v1185, %v1450
      %v1452 = vpop.f32.mrb[0].mxu0
      %v1453 = vadd.f32 %v1189, %v1452
      %1454 = vmatprep.mubr.bf16.mxu0 0
      %1455 = vmatmul.mubr.bf16.gmra.mrb[0].mxu0 %v403
      %v1456 = vpop.f32.mrb[0].mxu0
      %v1457 = vadd.f32 %v1185, %v1456
      %v1458 = vpop.f32.mrb[0].mxu0
      %v1459 = vadd.f32 %v1189, %v1458
      %v1460 = vpop.f32.mrb[0].mxu0
      %v1461 = vadd.f32 %v1185, %v1460
      %v1462 = vpop.f32.mrb[0].mxu0
      %v1463 = vadd.f32 %v1189, %v1462
      %1464 = vmatprep.mubr.bf16.mxu0 0
      %1465 = vmatmul.mubr.bf16.gmra.mrb[0].mxu0 %v406
      %v1466 = vpop.f32.mrb[0].mxu0
      %v1467 = vadd.f32 %v1185, %v1466
      %v1468 = vpop.f32.mrb[0].mxu0
      %v1469 = vadd.f32 %v1189, %v1468
      %v1470 = vpop.f32.mrb[0].mxu0
      %v1471 = vadd.f32 %v1185, %v1470
      %v1472 = vpop.f32.mrb[0].mxu0
      %v1473 = vadd.f32 %v1189, %v1472
      %1474 = vmatprep.mubr.bf16.mxu0 0
      %1475 = vmatmul.mubr.bf16.gmra.mrb[0].mxu0 %v409
      %v1476 = vpop.f32.mrb[0].mxu0
      %v1477 = vadd.f32 %v1185, %v1476
      %v1478 = vpop.f32.mrb[0].mxu0
      %v1479 = vadd.f32 %v1189, %v1478
      %v1480 = vpop.f32.mrb[0].mxu0
      %v1481 = vadd.f32 %v1185, %v1480
      %v1482 = vpop.f32.mrb[0].mxu0
      %v1483 = vadd.f32 %v1189, %v1482
      %1484 = vdwg.mxu0
      %v1485 = vmul.f32 %v1247, 0.01
      %v1486 = vmul.f32 %v1249, 0.01
      %v1487 = vmul.f32 %v1251, 0.01
      %v1488 = vmul.f32 %v1253, 0.01
      %v1489 = vmul.f32 %v1257, 0.01
      %v1490 = vmul.f32 %v1259, 0.01
      %v1491 = vmul.f32 %v1261, 0.01
      %v1492 = vmul.f32 %v1263, 0.01
      %v1493 = vmul.f32 %v1267, 0.01
      %v1494 = vmul.f32 %v1269, 0.01
      %v1495 = vmul.f32 %v1271, 0.01
      %v1496 = vmul.f32 %v1273, 0.01
      %v1497 = vmul.f32 %v1277, 0.01
      %v1498 = vmul.f32 %v1279, 0.01
      %v1499 = vmul.f32 %v1281, 0.01
      %v1500 = vmul.f32 %v1283, 0.01
      %v1501 = vmul.f32 %v1287, 0.01
      %v1502 = vmul.f32 %v1289, 0.01
      %v1503 = vmul.f32 %v1291, 0.01
      %v1504 = vmul.f32 %v1293, 0.01
      %v1505 = vmul.f32 %v1297, 0.01
      %v1506 = vmul.f32 %v1299, 0.01
      %v1507 = vmul.f32 %v1301, 0.01
      %v1508 = vmul.f32 %v1303, 0.01
      %v1509 = vmul.f32 %v1307, 0.01
      %v1510 = vmul.f32 %v1309, 0.01
      %v1511 = vmul.f32 %v1311, 0.01
      %v1512 = vmul.f32 %v1313, 0.01
      %v1513 = vmul.f32 %v1317, 0.01
      %v1514 = vmul.f32 %v1319, 0.01
      %v1515 = vmul.f32 %v1321, 0.01
      %v1516 = vmul.f32 %v1323, 0.01
      %v1517 = vmul.f32 %v1327, 0.01
      %v1518 = vmul.f32 %v1329, 0.01
      %v1519 = vmul.f32 %v1331, 0.01
      %v1520 = vmul.f32 %v1333, 0.01
      %v1521 = vmul.f32 %v1337, 0.01
      %v1522 = vmul.f32 %v1339, 0.01
      %v1523 = vmul.f32 %v1341, 0.01
      %v1524 = vmul.f32 %v1343, 0.01
      %v1525 = vmul.f32 %v1347, 0.01
      %v1526 = vmul.f32 %v1349, 0.01
      %v1527 = vmul.f32 %v1351, 0.01
      %v1528 = vmul.f32 %v1353, 0.01
      %v1529 = vmul.f32 %v1357, 0.01
      %v1530 = vmul.f32 %v1359, 0.01
      %v1531 = vmul.f32 %v1361, 0.01
      %v1532 = vmul.f32 %v1363, 0.01
      %v1533 = vmul.f32 %v1367, 0.01
      %v1534 = vmul.f32 %v1369, 0.01
      %v1535 = vmul.f32 %v1371, 0.01
      %v1536 = vmul.f32 %v1373, 0.01
      %v1537 = vmul.f32 %v1377, 0.01
      %v1538 = vmul.f32 %v1379, 0.01
      %v1539 = vmul.f32 %v1381, 0.01
      %v1540 = vmul.f32 %v1383, 0.01
      %v1541 = vmul.f32 %v1387, 0.01
      %v1542 = vmul.f32 %v1389, 0.01
      %v1543 = vmul.f32 %v1391, 0.01
      %v1544 = vmul.f32 %v1393, 0.01
      %v1545 = vmul.f32 %v1397, 0.01
      %v1546 = vmul.f32 %v1399, 0.01
      %v1547 = vmul.f32 %v1401, 0.01
      %v1548 = vmul.f32 %v1403, 0.01
      %v1549 = vmul.f32 %v1407, 0.01
      %v1550 = vmul.f32 %v1409, 0.01
      %v1551 = vmul.f32 %v1411, 0.01
      %v1552 = vmul.f32 %v1413, 0.01
      %v1553 = vmul.f32 %v1417, 0.01
      %v1554 = vmul.f32 %v1419, 0.01
      %v1555 = vmul.f32 %v1421, 0.01
      %v1556 = vmul.f32 %v1423, 0.01
      %v1557 = vmul.f32 %v1427, 0.01
      %v1558 = vmul.f32 %v1429, 0.01
      %v1559 = vmul.f32 %v1431, 0.01
      %v1560 = vmul.f32 %v1433, 0.01
      %v1561 = vmul.f32 %v1437, 0.01
      %v1562 = vmul.f32 %v1439, 0.01
      %v1563 = vmul.f32 %v1441, 0.01
      %v1564 = vmul.f32 %v1443, 0.01
      %v1565 = vmul.f32 %v1447, 0.01
      %v1566 = vmul.f32 %v1449, 0.01
      %v1567 = vmul.f32 %v1451, 0.01
      %v1568 = vmul.f32 %v1453, 0.01
      %v1569 = vmul.f32 %v1457, 0.01
      %v1570 = vmul.f32 %v1459, 0.01
      %v1571 = vmul.f32 %v1461, 0.01
      %v1572 = vmul.f32 %v1463, 0.01
      %v1573 = vmul.f32 %v1467, 0.01
      %v1574 = vmul.f32 %v1469, 0.01
      %v1575 = vmul.f32 %v1471, 0.01
      %v1576 = vmul.f32 %v1473, 0.01
      %v1577 = vmul.f32 %v1477, 0.01
      %v1578 = vmul.f32 %v1479, 0.01
      %v1579 = vmul.f32 %v1481, 0.01
      %v1580 = vmul.f32 %v1483, 0.01
      %v1581 = vmax.f32 %v1247, %v1485
      %v1582 = vmax.f32 %v1249, %v1486
      %v1583 = vmax.f32 %v1251, %v1487
      %v1584 = vmax.f32 %v1253, %v1488
      %v1585 = vmax.f32 %v1257, %v1489
      %v1586 = vmax.f32 %v1259, %v1490
      %v1587 = vmax.f32 %v1261, %v1491
      %v1588 = vmax.f32 %v1263, %v1492
      %v1589 = vmax.f32 %v1267, %v1493
      %v1590 = vmax.f32 %v1269, %v1494
      %v1591 = vmax.f32 %v1271, %v1495
      %v1592 = vmax.f32 %v1273, %v1496
      %v1593 = vmax.f32 %v1277, %v1497
      %v1594 = vmax.f32 %v1279, %v1498
      %v1595 = vmax.f32 %v1281, %v1499
      %v1596 = vmax.f32 %v1283, %v1500
      %v1597 = vmax.f32 %v1287, %v1501
      %v1598 = vmax.f32 %v1289, %v1502
      %v1599 = vmax.f32 %v1291, %v1503
      %v1600 = vmax.f32 %v1293, %v1504
      %v1601 = vmax.f32 %v1297, %v1505
      %v1602 = vmax.f32 %v1299, %v1506
      %v1603 = vmax.f32 %v1301, %v1507
      %v1604 = vmax.f32 %v1303, %v1508
      %v1605 = vmax.f32 %v1307, %v1509
      %v1606 = vmax.f32 %v1309, %v1510
      %v1607 = vmax.f32 %v1311, %v1511
      %v1608 = vmax.f32 %v1313, %v1512
      %v1609 = vmax.f32 %v1317, %v1513
      %v1610 = vmax.f32 %v1319, %v1514
      %v1611 = vmax.f32 %v1321, %v1515
      %v1612 = vmax.f32 %v1323, %v1516
      %v1613 = vmax.f32 %v1327, %v1517
      %v1614 = vmax.f32 %v1329, %v1518
      %v1615 = vmax.f32 %v1331, %v1519
      %v1616 = vmax.f32 %v1333, %v1520
      %v1617 = vmax.f32 %v1337, %v1521
      %v1618 = vmax.f32 %v1339, %v1522
      %v1619 = vmax.f32 %v1341, %v1523
      %v1620 = vmax.f32 %v1343, %v1524
      %v1621 = vmax.f32 %v1347, %v1525
      %v1622 = vmax.f32 %v1349, %v1526
      %v1623 = vmax.f32 %v1351, %v1527
      %v1624 = vmax.f32 %v1353, %v1528
      %v1625 = vmax.f32 %v1357, %v1529
      %v1626 = vmax.f32 %v1359, %v1530
      %v1627 = vmax.f32 %v1361, %v1531
      %v1628 = vmax.f32 %v1363, %v1532
      %v1629 = vmax.f32 %v1367, %v1533
      %v1630 = vmax.f32 %v1369, %v1534
      %v1631 = vmax.f32 %v1371, %v1535
      %v1632 = vmax.f32 %v1373, %v1536
      %v1633 = vmax.f32 %v1377, %v1537
      %v1634 = vmax.f32 %v1379, %v1538
      %v1635 = vmax.f32 %v1381, %v1539
      %v1636 = vmax.f32 %v1383, %v1540
      %v1637 = vmax.f32 %v1387, %v1541
      %v1638 = vmax.f32 %v1389, %v1542
      %v1639 = vmax.f32 %v1391, %v1543
      %v1640 = vmax.f32 %v1393, %v1544
      %v1641 = vmax.f32 %v1397, %v1545
      %v1642 = vmax.f32 %v1399, %v1546
      %v1643 = vmax.f32 %v1401, %v1547
      %v1644 = vmax.f32 %v1403, %v1548
      %v1645 = vmax.f32 %v1407, %v1549
      %v1646 = vmax.f32 %v1409, %v1550
      %v1647 = vmax.f32 %v1411, %v1551
      %v1648 = vmax.f32 %v1413, %v1552
      %v1649 = vmax.f32 %v1417, %v1553
      %v1650 = vmax.f32 %v1419, %v1554
      %v1651 = vmax.f32 %v1421, %v1555
      %v1652 = vmax.f32 %v1423, %v1556
      %v1653 = vmax.f32 %v1427, %v1557
      %v1654 = vmax.f32 %v1429, %v1558
      %v1655 = vmax.f32 %v1431, %v1559
      %v1656 = vmax.f32 %v1433, %v1560
      %v1657 = vmax.f32 %v1437, %v1561
      %v1658 = vmax.f32 %v1439, %v1562
      %v1659 = vmax.f32 %v1441, %v1563
      %v1660 = vmax.f32 %v1443, %v1564
      %v1661 = vmax.f32 %v1447, %v1565
      %v1662 = vmax.f32 %v1449, %v1566
      %v1663 = vmax.f32 %v1451, %v1567
      %v1664 = vmax.f32 %v1453, %v1568
      %v1665 = vmax.f32 %v1457, %v1569
      %v1666 = vmax.f32 %v1459, %v1570
      %v1667 = vmax.f32 %v1461, %v1571
      %v1668 = vmax.f32 %v1463, %v1572
      %v1669 = vmax.f32 %v1467, %v1573
      %v1670 = vmax.f32 %v1469, %v1574
      %v1671 = vmax.f32 %v1471, %v1575
      %v1672 = vmax.f32 %v1473, %v1576
      %v1673 = vmax.f32 %v1477, %v1577
      %v1674 = vmax.f32 %v1479, %v1578
      %v1675 = vmax.f32 %v1481, %v1579
      %v1676 = vmax.f32 %v1483, %v1580
      %v1677 = vld [vmem:[%s3 + $0x2] sm:$0x3]
      %v1679 = vlaneseq
      %v1680 = vshrl.u32 %v1679, 7
      %v1681 = vsub.s32 0, %v1680
      %v1682 = vrot.slane %v1677, %v1681
      %v1683 = vlaneseq
      %v1684 = vshrl.u32 %v1683, 7
      %v1685 = vsub.s32 1, %v1684
      %v1686 = vrot.slane %v1677, %v1685
      %v1689 = vmul.f32 %v1581, %v1682
      %v1690 = vmul.f32 %v1582, %v1686
      %v1691 = vmul.f32 %v1583, %v1682
      %v1692 = vmul.f32 %v1584, %v1686
      %v1693 = vmul.f32 %v1585, %v1682
      %v1694 = vmul.f32 %v1586, %v1686
      %v1695 = vmul.f32 %v1587, %v1682
      %v1696 = vmul.f32 %v1588, %v1686
      %v1697 = vmul.f32 %v1589, %v1682
      %v1698 = vmul.f32 %v1590, %v1686
      %v1699 = vmul.f32 %v1591, %v1682
      %v1700 = vmul.f32 %v1592, %v1686
      %v1701 = vmul.f32 %v1593, %v1682
      %v1702 = vmul.f32 %v1594, %v1686
      %v1703 = vmul.f32 %v1595, %v1682
      %v1704 = vmul.f32 %v1596, %v1686
      %v1705 = vmul.f32 %v1597, %v1682
      %v1706 = vmul.f32 %v1598, %v1686
      %v1707 = vmul.f32 %v1599, %v1682
      %v1708 = vmul.f32 %v1600, %v1686
      %v1709 = vmul.f32 %v1601, %v1682
      %v1710 = vmul.f32 %v1602, %v1686
      %v1711 = vmul.f32 %v1603, %v1682
      %v1712 = vmul.f32 %v1604, %v1686
      %v1713 = vmul.f32 %v1605, %v1682
      %v1714 = vmul.f32 %v1606, %v1686
      %v1715 = vmul.f32 %v1607, %v1682
      %v1716 = vmul.f32 %v1608, %v1686
      %v1717 = vmul.f32 %v1609, %v1682
      %v1718 = vmul.f32 %v1610, %v1686
      %v1719 = vmul.f32 %v1611, %v1682
      %v1720 = vmul.f32 %v1612, %v1686
      %v1721 = vmul.f32 %v1613, %v1682
      %v1722 = vmul.f32 %v1614, %v1686
      %v1723 = vmul.f32 %v1615, %v1682
      %v1724 = vmul.f32 %v1616, %v1686
      %v1725 = vmul.f32 %v1617, %v1682
      %v1726 = vmul.f32 %v1618, %v1686
      %v1727 = vmul.f32 %v1619, %v1682
      %v1728 = vmul.f32 %v1620, %v1686
      %v1729 = vmul.f32 %v1621, %v1682
      %v1730 = vmul.f32 %v1622, %v1686
      %v1731 = vmul.f32 %v1623, %v1682
      %v1732 = vmul.f32 %v1624, %v1686
      %v1733 = vmul.f32 %v1625, %v1682
      %v1734 = vmul.f32 %v1626, %v1686
      %v1735 = vmul.f32 %v1627, %v1682
      %v1736 = vmul.f32 %v1628, %v1686
      %v1737 = vmul.f32 %v1629, %v1682
      %v1738 = vmul.f32 %v1630, %v1686
      %v1739 = vmul.f32 %v1631, %v1682
      %v1740 = vmul.f32 %v1632, %v1686
      %v1741 = vmul.f32 %v1633, %v1682
      %v1742 = vmul.f32 %v1634, %v1686
      %v1743 = vmul.f32 %v1635, %v1682
      %v1744 = vmul.f32 %v1636, %v1686
      %v1745 = vmul.f32 %v1637, %v1682
      %v1746 = vmul.f32 %v1638, %v1686
      %v1747 = vmul.f32 %v1639, %v1682
      %v1748 = vmul.f32 %v1640, %v1686
      %v1749 = vmul.f32 %v1641, %v1682
      %v1750 = vmul.f32 %v1642, %v1686
      %v1751 = vmul.f32 %v1643, %v1682
      %v1752 = vmul.f32 %v1644, %v1686
      %v1753 = vmul.f32 %v1645, %v1682
      %v1754 = vmul.f32 %v1646, %v1686
      %v1755 = vmul.f32 %v1647, %v1682
      %v1756 = vmul.f32 %v1648, %v1686
      %v1757 = vmul.f32 %v1649, %v1682
      %v1758 = vmul.f32 %v1650, %v1686
      %v1759 = vmul.f32 %v1651, %v1682
      %v1760 = vmul.f32 %v1652, %v1686
      %v1761 = vmul.f32 %v1653, %v1682
      %v1762 = vmul.f32 %v1654, %v1686
      %v1763 = vmul.f32 %v1655, %v1682
      %v1764 = vmul.f32 %v1656, %v1686
      %v1765 = vmul.f32 %v1657, %v1682
      %v1766 = vmul.f32 %v1658, %v1686
      %v1767 = vmul.f32 %v1659, %v1682
      %v1768 = vmul.f32 %v1660, %v1686
      %v1769 = vmul.f32 %v1661, %v1682
      %v1770 = vmul.f32 %v1662, %v1686
      %v1771 = vmul.f32 %v1663, %v1682
      %v1772 = vmul.f32 %v1664, %v1686
      %v1773 = vmul.f32 %v1665, %v1682
      %v1774 = vmul.f32 %v1666, %v1686
      %v1775 = vmul.f32 %v1667, %v1682
      %v1776 = vmul.f32 %v1668, %v1686
      %v1777 = vmul.f32 %v1669, %v1682
      %v1778 = vmul.f32 %v1670, %v1686
      %v1779 = vmul.f32 %v1671, %v1682
      %v1780 = vmul.f32 %v1672, %v1686
      %v1781 = vmul.f32 %v1673, %v1682
      %v1782 = vmul.f32 %v1674, %v1686
      %v1783 = vmul.f32 %v1675, %v1682
      %v1784 = vmul.f32 %v1676, %v1686
      %v1785 = vadd.f32 %v1689, %v1690
      %1786 = vadd.xlane.f32.xlu0 %v1785
      %v1787 = vpop.xlane.xlu0 %1786
      %v1788 = vadd.f32 %v1691, %v1692
      %1789 = vadd.xlane.f32.xlu0 %v1788
      %v1790 = vpop.xlane.xlu0 %1789
      %v1791 = vadd.f32 %v1693, %v1694
      %1792 = vadd.xlane.f32.xlu0 %v1791
      %v1793 = vpop.xlane.xlu0 %1792
      %v1794 = vadd.f32 %v1695, %v1696
      %1795 = vadd.xlane.f32.xlu0 %v1794
      %v1796 = vpop.xlane.xlu0 %1795
      %v1797 = vadd.f32 %v1697, %v1698
      %1798 = vadd.xlane.f32.xlu0 %v1797
      %v1799 = vpop.xlane.xlu0 %1798
      %v1800 = vadd.f32 %v1699, %v1700
      %1801 = vadd.xlane.f32.xlu0 %v1800
      %v1802 = vpop.xlane.xlu0 %1801
      %v1803 = vadd.f32 %v1701, %v1702
      %1804 = vadd.xlane.f32.xlu0 %v1803
      %v1805 = vpop.xlane.xlu0 %1804
      %v1806 = vadd.f32 %v1703, %v1704
      %1807 = vadd.xlane.f32.xlu0 %v1806
      %v1808 = vpop.xlane.xlu0 %1807
      %v1809 = vadd.f32 %v1705, %v1706
      %1810 = vadd.xlane.f32.xlu0 %v1809
      %v1811 = vpop.xlane.xlu0 %1810
      %v1812 = vadd.f32 %v1707, %v1708
      %1813 = vadd.xlane.f32.xlu0 %v1812
      %v1814 = vpop.xlane.xlu0 %1813
      %v1815 = vadd.f32 %v1709, %v1710
      %1816 = vadd.xlane.f32.xlu0 %v1815
      %v1817 = vpop.xlane.xlu0 %1816
      %v1818 = vadd.f32 %v1711, %v1712
      %1819 = vadd.xlane.f32.xlu0 %v1818
      %v1820 = vpop.xlane.xlu0 %1819
      %v1821 = vadd.f32 %v1713, %v1714
      %1822 = vadd.xlane.f32.xlu0 %v1821
      %v1823 = vpop.xlane.xlu0 %1822
      %v1824 = vadd.f32 %v1715, %v1716
      %1825 = vadd.xlane.f32.xlu0 %v1824
      %v1826 = vpop.xlane.xlu0 %1825
      %v1827 = vadd.f32 %v1717, %v1718
      %1828 = vadd.xlane.f32.xlu0 %v1827
      %v1829 = vpop.xlane.xlu0 %1828
      %v1830 = vadd.f32 %v1719, %v1720
      %1831 = vadd.xlane.f32.xlu0 %v1830
      %v1832 = vpop.xlane.xlu0 %1831
      %v1833 = vadd.f32 %v1721, %v1722
      %1834 = vadd.xlane.f32.xlu0 %v1833
      %v1835 = vpop.xlane.xlu0 %1834
      %v1836 = vadd.f32 %v1723, %v1724
      %1837 = vadd.xlane.f32.xlu0 %v1836
      %v1838 = vpop.xlane.xlu0 %1837
      %v1839 = vadd.f32 %v1725, %v1726
      %1840 = vadd.xlane.f32.xlu0 %v1839
      %v1841 = vpop.xlane.xlu0 %1840
      %v1842 = vadd.f32 %v1727, %v1728
      %1843 = vadd.xlane.f32.xlu0 %v1842
      %v1844 = vpop.xlane.xlu0 %1843
      %v1845 = vadd.f32 %v1729, %v1730
      %1846 = vadd.xlane.f32.xlu0 %v1845
      %v1847 = vpop.xlane.xlu0 %1846
      %v1848 = vadd.f32 %v1731, %v1732
      %1849 = vadd.xlane.f32.xlu0 %v1848
      %v1850 = vpop.xlane.xlu0 %1849
      %v1851 = vadd.f32 %v1733, %v1734
      %1852 = vadd.xlane.f32.xlu0 %v1851
      %v1853 = vpop.xlane.xlu0 %1852
      %v1854 = vadd.f32 %v1735, %v1736
      %1855 = vadd.xlane.f32.xlu0 %v1854
      %v1856 = vpop.xlane.xlu0 %1855
      %v1857 = vadd.f32 %v1737, %v1738
      %1858 = vadd.xlane.f32.xlu0 %v1857
      %v1859 = vpop.xlane.xlu0 %1858
      %v1860 = vadd.f32 %v1739, %v1740
      %1861 = vadd.xlane.f32.xlu0 %v1860
      %v1862 = vpop.xlane.xlu0 %1861
      %v1863 = vadd.f32 %v1741, %v1742
      %1864 = vadd.xlane.f32.xlu0 %v1863
      %v1865 = vpop.xlane.xlu0 %1864
      %v1866 = vadd.f32 %v1743, %v1744
      %1867 = vadd.xlane.f32.xlu0 %v1866
      %v1868 = vpop.xlane.xlu0 %1867
      %v1869 = vadd.f32 %v1745, %v1746
      %1870 = vadd.xlane.f32.xlu0 %v1869
      %v1871 = vpop.xlane.xlu0 %1870
      %v1872 = vadd.f32 %v1747, %v1748
      %1873 = vadd.xlane.f32.xlu0 %v1872
      %v1874 = vpop.xlane.xlu0 %1873
      %v1875 = vadd.f32 %v1749, %v1750
      %1876 = vadd.xlane.f32.xlu0 %v1875
      %v1877 = vpop.xlane.xlu0 %1876
      %v1878 = vadd.f32 %v1751, %v1752
      %1879 = vadd.xlane.f32.xlu0 %v1878
      %v1880 = vpop.xlane.xlu0 %1879
      %v1881 = vadd.f32 %v1753, %v1754
      %1882 = vadd.xlane.f32.xlu0 %v1881
      %v1883 = vpop.xlane.xlu0 %1882
      %v1884 = vadd.f32 %v1755, %v1756
      %1885 = vadd.xlane.f32.xlu0 %v1884
      %v1886 = vpop.xlane.xlu0 %1885
      %v1887 = vadd.f32 %v1757, %v1758
      %1888 = vadd.xlane.f32.xlu0 %v1887
      %v1889 = vpop.xlane.xlu0 %1888
      %v1890 = vadd.f32 %v1759, %v1760
      %1891 = vadd.xlane.f32.xlu0 %v1890
      %v1892 = vpop.xlane.xlu0 %1891
      %v1893 = vadd.f32 %v1761, %v1762
      %1894 = vadd.xlane.f32.xlu0 %v1893
      %v1895 = vpop.xlane.xlu0 %1894
      %v1896 = vadd.f32 %v1763, %v1764
      %1897 = vadd.xlane.f32.xlu0 %v1896
      %v1898 = vpop.xlane.xlu0 %1897
      %v1899 = vadd.f32 %v1765, %v1766
      %1900 = vadd.xlane.f32.xlu0 %v1899
      %v1901 = vpop.xlane.xlu0 %1900
      %v1902 = vadd.f32 %v1767, %v1768
      %1903 = vadd.xlane.f32.xlu0 %v1902
      %v1904 = vpop.xlane.xlu0 %1903
      %v1905 = vadd.f32 %v1769, %v1770
      %1906 = vadd.xlane.f32.xlu0 %v1905
      %v1907 = vpop.xlane.xlu0 %1906
      %v1908 = vadd.f32 %v1771, %v1772
      %1909 = vadd.xlane.f32.xlu0 %v1908
      %v1910 = vpop.xlane.xlu0 %1909
      %v1911 = vadd.f32 %v1773, %v1774
      %1912 = vadd.xlane.f32.xlu0 %v1911
      %v1913 = vpop.xlane.xlu0 %1912
      %v1914 = vadd.f32 %v1775, %v1776
      %1915 = vadd.xlane.f32.xlu0 %v1914
      %v1916 = vpop.xlane.xlu0 %1915
      %v1917 = vadd.f32 %v1777, %v1778
      %1918 = vadd.xlane.f32.xlu0 %v1917
      %v1919 = vpop.xlane.xlu0 %1918
      %v1920 = vadd.f32 %v1779, %v1780
      %1921 = vadd.xlane.f32.xlu0 %v1920
      %v1922 = vpop.xlane.xlu0 %1921
      %v1923 = vadd.f32 %v1781, %v1782
      %1924 = vadd.xlane.f32.xlu0 %v1923
      %v1925 = vpop.xlane.xlu0 %1924
      %v1926 = vadd.f32 %v1783, %v1784
      %1927 = vadd.xlane.f32.xlu0 %v1926
      %v1928 = vpop.xlane.xlu0 %1927
      %v1929 = vadd.f32 %v1128, %v1787
      %v1930 = vadd.f32 %v1129, %v1790
      %v1931 = vadd.f32 %v1130, %v1793
      %v1932 = vadd.f32 %v1131, %v1796
      %v1933 = vadd.f32 %v1132, %v1799
      %v1934 = vadd.f32 %v1133, %v1802
      %v1935 = vadd.f32 %v1134, %v1805
      %v1936 = vadd.f32 %v1135, %v1808
      %v1937 = vadd.f32 %v1136, %v1811
      %v1938 = vadd.f32 %v1137, %v1814
      %v1939 = vadd.f32 %v1138, %v1817
      %v1940 = vadd.f32 %v1139, %v1820
      %v1941 = vadd.f32 %v1140, %v1823
      %v1942 = vadd.f32 %v1141, %v1826
      %v1943 = vadd.f32 %v1142, %v1829
      %v1944 = vadd.f32 %v1143, %v1832
      %v1945 = vadd.f32 %v1144, %v1835
      %v1946 = vadd.f32 %v1145, %v1838
      %v1947 = vadd.f32 %v1146, %v1841
      %v1948 = vadd.f32 %v1147, %v1844
      %v1949 = vadd.f32 %v1148, %v1847
      %v1950 = vadd.f32 %v1149, %v1850
      %v1951 = vadd.f32 %v1150, %v1853
      %v1952 = vadd.f32 %v1151, %v1856
      %v1953 = vadd.f32 %v1152, %v1859
      %v1954 = vadd.f32 %v1153, %v1862
      %v1955 = vadd.f32 %v1154, %v1865
      %v1956 = vadd.f32 %v1155, %v1868
      %v1957 = vadd.f32 %v1156, %v1871
      %v1958 = vadd.f32 %v1157, %v1874
      %v1959 = vadd.f32 %v1158, %v1877
      %v1960 = vadd.f32 %v1159, %v1880
      %v1961 = vadd.f32 %v1160, %v1883
      %v1962 = vadd.f32 %v1161, %v1886
      %v1963 = vadd.f32 %v1162, %v1889
      %v1964 = vadd.f32 %v1163, %v1892
      %v1965 = vadd.f32 %v1164, %v1895
      %v1966 = vadd.f32 %v1165, %v1898
      %v1967 = vadd.f32 %v1166, %v1901
      %v1968 = vadd.f32 %v1167, %v1904
      %v1969 = vadd.f32 %v1168, %v1907
      %v1970 = vadd.f32 %v1169, %v1910
      %v1971 = vadd.f32 %v1170, %v1913
      %v1972 = vadd.f32 %v1171, %v1916
      %v1973 = vadd.f32 %v1172, %v1919
      %v1974 = vadd.f32 %v1173, %v1922
      %v1975 = vadd.f32 %v1174, %v1925
      %v1976 = vadd.f32 %v1175, %v1928
      %s1977 = sld [smem:[#allocation2]]
      %v1978 = vstv %s1977
      %v1979 = vadd.f32 %v1929, %v1978
      %v1980 = vadd.f32 %v1930, %v1978
      %v1981 = vadd.f32 %v1931, %v1978
      %v1982 = vadd.f32 %v1932, %v1978
      %v1983 = vadd.f32 %v1933, %v1978
      %v1984 = vadd.f32 %v1934, %v1978
      %v1985 = vadd.f32 %v1935, %v1978
      %v1986 = vadd.f32 %v1936, %v1978
      %v1987 = vadd.f32 %v1937, %v1978
      %v1988 = vadd.f32 %v1938, %v1978
      %v1989 = vadd.f32 %v1939, %v1978
      %v1990 = vadd.f32 %v1940, %v1978
      %v1991 = vadd.f32 %v1941, %v1978
      %v1992 = vadd.f32 %v1942, %v1978
      %v1993 = vadd.f32 %v1943, %v1978
      %v1994 = vadd.f32 %v1944, %v1978
      %v1995 = vadd.f32 %v1945, %v1978
      %v1996 = vadd.f32 %v1946, %v1978
      %v1997 = vadd.f32 %v1947, %v1978
      %v1998 = vadd.f32 %v1948, %v1978
      %v1999 = vadd.f32 %v1949, %v1978
      %v2000 = vadd.f32 %v1950, %v1978
      %v2001 = vadd.f32 %v1951, %v1978
      %v2002 = vadd.f32 %v1952, %v1978
      %v2003 = vadd.f32 %v1953, %v1978
      %v2004 = vadd.f32 %v1954, %v1978
      %v2005 = vadd.f32 %v1955, %v1978
      %v2006 = vadd.f32 %v1956, %v1978
      %v2007 = vadd.f32 %v1957, %v1978
      %v2008 = vadd.f32 %v1958, %v1978
      %v2009 = vadd.f32 %v1959, %v1978
      %v2010 = vadd.f32 %v1960, %v1978
      %v2011 = vadd.f32 %v1961, %v1978
      %v2012 = vadd.f32 %v1962, %v1978
      %v2013 = vadd.f32 %v1963, %v1978
      %v2014 = vadd.f32 %v1964, %v1978
      %v2015 = vadd.f32 %v1965, %v1978
      %v2016 = vadd.f32 %v1966, %v1978
      %v2017 = vadd.f32 %v1967, %v1978
      %v2018 = vadd.f32 %v1968, %v1978
      %v2019 = vadd.f32 %v1969, %v1978
      %v2020 = vadd.f32 %v1970, %v1978
      %v2021 = vadd.f32 %v1971, %v1978
      %v2022 = vadd.f32 %v1972, %v1978
      %v2023 = vadd.f32 %v1973, %v1978
      %v2024 = vadd.f32 %v1974, %v1978
      %v2025 = vadd.f32 %v1975, %v1978
      %v2026 = vadd.f32 %v1976, %v1978
      %v2027 = vmul.f32 %v1979, 0.5
      %v2028 = vmul.f32 %v1980, 0.5
      %v2029 = vmul.f32 %v1981, 0.5
      %v2030 = vmul.f32 %v1982, 0.5
      %v2031 = vmul.f32 %v1983, 0.5
      %v2032 = vmul.f32 %v1984, 0.5
      %v2033 = vmul.f32 %v1985, 0.5
      %v2034 = vmul.f32 %v1986, 0.5
      %v2035 = vmul.f32 %v1987, 0.5
      %v2036 = vmul.f32 %v1988, 0.5
      %v2037 = vmul.f32 %v1989, 0.5
      %v2038 = vmul.f32 %v1990, 0.5
      %v2039 = vmul.f32 %v1991, 0.5
      %v2040 = vmul.f32 %v1992, 0.5
      %v2041 = vmul.f32 %v1993, 0.5
      %v2042 = vmul.f32 %v1994, 0.5
      %v2043 = vmul.f32 %v1995, 0.5
      %v2044 = vmul.f32 %v1996, 0.5
      %v2045 = vmul.f32 %v1997, 0.5
      %v2046 = vmul.f32 %v1998, 0.5
      %v2047 = vmul.f32 %v1999, 0.5
      %v2048 = vmul.f32 %v2000, 0.5
      %v2049 = vmul.f32 %v2001, 0.5
      %v2050 = vmul.f32 %v2002, 0.5
      %v2051 = vmul.f32 %v2003, 0.5
      %v2052 = vmul.f32 %v2004, 0.5
      %v2053 = vmul.f32 %v2005, 0.5
      %v2054 = vmul.f32 %v2006, 0.5
      %v2055 = vmul.f32 %v2007, 0.5
      %v2056 = vmul.f32 %v2008, 0.5
      %v2057 = vmul.f32 %v2009, 0.5
      %v2058 = vmul.f32 %v2010, 0.5
      %v2059 = vmul.f32 %v2011, 0.5
      %v2060 = vmul.f32 %v2012, 0.5
      %v2061 = vmul.f32 %v2013, 0.5
      %v2062 = vmul.f32 %v2014, 0.5
      %v2063 = vmul.f32 %v2015, 0.5
      %v2064 = vmul.f32 %v2016, 0.5
      %v2065 = vmul.f32 %v2017, 0.5
      %v2066 = vmul.f32 %v2018, 0.5
      %v2067 = vmul.f32 %v2019, 0.5
      %v2068 = vmul.f32 %v2020, 0.5
      %v2069 = vmul.f32 %v2021, 0.5
      %v2070 = vmul.f32 %v2022, 0.5
      %v2071 = vmul.f32 %v2023, 0.5
      %v2072 = vmul.f32 %v2024, 0.5
      %v2073 = vmul.f32 %v2025, 0.5
      %v2074 = vmul.f32 %v2026, 0.5
      %v2075 = vtanh.pop %v2027
      %v2076 = vtanh.pop %v2028
      %v2077 = vtanh.pop %v2029
      %v2078 = vtanh.pop %v2030
      %v2079 = vtanh.pop %v2031
      %v2080 = vtanh.pop %v2032
      %v2081 = vtanh.pop %v2033
      %v2082 = vtanh.pop %v2034
      %v2083 = vtanh.pop %v2035
      %v2084 = vtanh.pop %v2036
      %v2085 = vtanh.pop %v2037
      %v2086 = vtanh.pop %v2038
      %v2087 = vtanh.pop %v2039
      %v2088 = vtanh.pop %v2040
      %v2089 = vtanh.pop %v2041
      %v2090 = vtanh.pop %v2042
      %v2091 = vtanh.pop %v2043
      %v2092 = vtanh.pop %v2044
      %v2093 = vtanh.pop %v2045
      %v2094 = vtanh.pop %v2046
      %v2095 = vtanh.pop %v2047
      %v2096 = vtanh.pop %v2048
      %v2097 = vtanh.pop %v2049
      %v2098 = vtanh.pop %v2050
      %v2099 = vtanh.pop %v2051
      %v2100 = vtanh.pop %v2052
      %v2101 = vtanh.pop %v2053
      %v2102 = vtanh.pop %v2054
      %v2103 = vtanh.pop %v2055
      %v2104 = vtanh.pop %v2056
      %v2105 = vtanh.pop %v2057
      %v2106 = vtanh.pop %v2058
      %v2107 = vtanh.pop %v2059
      %v2108 = vtanh.pop %v2060
      %v2109 = vtanh.pop %v2061
      %v2110 = vtanh.pop %v2062
      %v2111 = vtanh.pop %v2063
      %v2112 = vtanh.pop %v2064
      %v2113 = vtanh.pop %v2065
      %v2114 = vtanh.pop %v2066
      %v2115 = vtanh.pop %v2067
      %v2116 = vtanh.pop %v2068
      %v2117 = vtanh.pop %v2069
      %v2118 = vtanh.pop %v2070
      %v2119 = vtanh.pop %v2071
      %v2120 = vtanh.pop %v2072
      %v2121 = vtanh.pop %v2073
      %v2122 = vtanh.pop %v2074
      %v2123 = vmul.f32 %v2075, 0.5
      %v2124 = vmul.f32 %v2076, 0.5
      %v2125 = vmul.f32 %v2077, 0.5
      %v2126 = vmul.f32 %v2078, 0.5
      %v2127 = vmul.f32 %v2079, 0.5
      %v2128 = vmul.f32 %v2080, 0.5
      %v2129 = vmul.f32 %v2081, 0.5
      %v2130 = vmul.f32 %v2082, 0.5
      %v2131 = vmul.f32 %v2083, 0.5
      %v2132 = vmul.f32 %v2084, 0.5
      %v2133 = vmul.f32 %v2085, 0.5
      %v2134 = vmul.f32 %v2086, 0.5
      %v2135 = vmul.f32 %v2087, 0.5
      %v2136 = vmul.f32 %v2088, 0.5
      %v2137 = vmul.f32 %v2089, 0.5
      %v2138 = vmul.f32 %v2090, 0.5
      %v2139 = vmul.f32 %v2091, 0.5
      %v2140 = vmul.f32 %v2092, 0.5
      %v2141 = vmul.f32 %v2093, 0.5
      %v2142 = vmul.f32 %v2094, 0.5
      %v2143 = vmul.f32 %v2095, 0.5
      %v2144 = vmul.f32 %v2096, 0.5
      %v2145 = vmul.f32 %v2097, 0.5
      %v2146 = vmul.f32 %v2098, 0.5
      %v2147 = vmul.f32 %v2099, 0.5
      %v2148 = vmul.f32 %v2100, 0.5
      %v2149 = vmul.f32 %v2101, 0.5
      %v2150 = vmul.f32 %v2102, 0.5
      %v2151 = vmul.f32 %v2103, 0.5
      %v2152 = vmul.f32 %v2104, 0.5
      %v2153 = vmul.f32 %v2105, 0.5
      %v2154 = vmul.f32 %v2106, 0.5
      %v2155 = vmul.f32 %v2107, 0.5
      %v2156 = vmul.f32 %v2108, 0.5
      %v2157 = vmul.f32 %v2109, 0.5
      %v2158 = vmul.f32 %v2110, 0.5
      %v2159 = vmul.f32 %v2111, 0.5
      %v2160 = vmul.f32 %v2112, 0.5
      %v2161 = vmul.f32 %v2113, 0.5
      %v2162 = vmul.f32 %v2114, 0.5
      %v2163 = vmul.f32 %v2115, 0.5
      %v2164 = vmul.f32 %v2116, 0.5
      %v2165 = vmul.f32 %v2117, 0.5
      %v2166 = vmul.f32 %v2118, 0.5
      %v2167 = vmul.f32 %v2119, 0.5
      %v2168 = vmul.f32 %v2120, 0.5
      %v2169 = vmul.f32 %v2121, 0.5
      %v2170 = vmul.f32 %v2122, 0.5
      %v2171 = vadd.f32 %v2123, 0.5
      %v2172 = vadd.f32 %v2124, 0.5
      %v2173 = vadd.f32 %v2125, 0.5
      %v2174 = vadd.f32 %v2126, 0.5
      %v2175 = vadd.f32 %v2127, 0.5
      %v2176 = vadd.f32 %v2128, 0.5
      %v2177 = vadd.f32 %v2129, 0.5
      %v2178 = vadd.f32 %v2130, 0.5
      %v2179 = vadd.f32 %v2131, 0.5
      %v2180 = vadd.f32 %v2132, 0.5
      %v2181 = vadd.f32 %v2133, 0.5
      %v2182 = vadd.f32 %v2134, 0.5
      %v2183 = vadd.f32 %v2135, 0.5
      %v2184 = vadd.f32 %v2136, 0.5
      %v2185 = vadd.f32 %v2137, 0.5
      %v2186 = vadd.f32 %v2138, 0.5
      %v2187 = vadd.f32 %v2139, 0.5
      %v2188 = vadd.f32 %v2140, 0.5
      %v2189 = vadd.f32 %v2141, 0.5
      %v2190 = vadd.f32 %v2142, 0.5
      %v2191 = vadd.f32 %v2143, 0.5
      %v2192 = vadd.f32 %v2144, 0.5
      %v2193 = vadd.f32 %v2145, 0.5
      %v2194 = vadd.f32 %v2146, 0.5
      %v2195 = vadd.f32 %v2147, 0.5
      %v2196 = vadd.f32 %v2148, 0.5
      %v2197 = vadd.f32 %v2149, 0.5
      %v2198 = vadd.f32 %v2150, 0.5
      %v2199 = vadd.f32 %v2151, 0.5
      %v2200 = vadd.f32 %v2152, 0.5
      %v2201 = vadd.f32 %v2153, 0.5
      %v2202 = vadd.f32 %v2154, 0.5
      %v2203 = vadd.f32 %v2155, 0.5
      %v2204 = vadd.f32 %v2156, 0.5
      %v2205 = vadd.f32 %v2157, 0.5
      %v2206 = vadd.f32 %v2158, 0.5
      %v2207 = vadd.f32 %v2159, 0.5
      %v2208 = vadd.f32 %v2160, 0.5
      %v2209 = vadd.f32 %v2161, 0.5
      %v2210 = vadd.f32 %v2162, 0.5
      %v2211 = vadd.f32 %v2163, 0.5
      %v2212 = vadd.f32 %v2164, 0.5
      %v2213 = vadd.f32 %v2165, 0.5
      %v2214 = vadd.f32 %v2166, 0.5
      %v2215 = vadd.f32 %v2167, 0.5
      %v2216 = vadd.f32 %v2168, 0.5
      %v2217 = vadd.f32 %v2169, 0.5
      %v2218 = vadd.f32 %v2170, 0.5
      %vm2219 = vcmask 7168
      %2220 = vst.msk [vmem:[%s227] sm:$0xff] %vm2219, %v2171
      %2221 = vst.msk [vmem:[%s227 + $0x8] sm:$0xff] %vm2219, %v2172
      %2222 = vst.msk [vmem:[%s227 + $0x10] sm:$0xff] %vm2219, %v2173
      %2223 = vst.msk [vmem:[%s227 + $0x18] sm:$0xff] %vm2219, %v2174
      %2224 = vst.msk [vmem:[%s227 + $0x20] sm:$0xff] %vm2219, %v2175
      %2225 = vst.msk [vmem:[%s227 + $0x28] sm:$0xff] %vm2219, %v2176
      %2226 = vst.msk [vmem:[%s227 + $0x30] sm:$0xff] %vm2219, %v2177
      %2227 = vst.msk [vmem:[%s227 + $0x38] sm:$0xff] %vm2219, %v2178
      %2228 = vst.msk [vmem:[%s227 + $0x40] sm:$0xff] %vm2219, %v2179
      %2229 = vst.msk [vmem:[%s227 + $0x48] sm:$0xff] %vm2219, %v2180
      %2230 = vst.msk [vmem:[%s227 + $0x50] sm:$0xff] %vm2219, %v2181
      %2231 = vst.msk [vmem:[%s227 + $0x58] sm:$0xff] %vm2219, %v2182
      %2232 = vst.msk [vmem:[%s227 + $0x60] sm:$0xff] %vm2219, %v2183
      %2233 = vst.msk [vmem:[%s227 + $0x68] sm:$0xff] %vm2219, %v2184
      %2234 = vst.msk [vmem:[%s227 + $0x70] sm:$0xff] %vm2219, %v2185
      %2235 = vst.msk [vmem:[%s227 + $0x78] sm:$0xff] %vm2219, %v2186
      %2236 = vst.msk [vmem:[%s227 + $0x80] sm:$0xff] %vm2219, %v2187
      %2237 = vst.msk [vmem:[%s227 + $0x88] sm:$0xff] %vm2219, %v2188
      %2238 = vst.msk [vmem:[%s227 + $0x90] sm:$0xff] %vm2219, %v2189
      %2239 = vst.msk [vmem:[%s227 + $0x98] sm:$0xff] %vm2219, %v2190
      %2240 = vst.msk [vmem:[%s227 + $0xa0] sm:$0xff] %vm2219, %v2191
      %2241 = vst.msk [vmem:[%s227 + $0xa8] sm:$0xff] %vm2219, %v2192
      %2242 = vst.msk [vmem:[%s227 + $0xb0] sm:$0xff] %vm2219, %v2193
      %2243 = vst.msk [vmem:[%s227 + $0xb8] sm:$0xff] %vm2219, %v2194
      %2244 = vst.msk [vmem:[%s227 + $0xc0] sm:$0xff] %vm2219, %v2195
      %2245 = vst.msk [vmem:[%s227 + $0xc8] sm:$0xff] %vm2219, %v2196
      %2246 = vst.msk [vmem:[%s227 + $0xd0] sm:$0xff] %vm2219, %v2197
      %2247 = vst.msk [vmem:[%s227 + $0xd8] sm:$0xff] %vm2219, %v2198
      %2248 = vst.msk [vmem:[%s227 + $0xe0] sm:$0xff] %vm2219, %v2199
      %2249 = vst.msk [vmem:[%s227 + $0xe8] sm:$0xff] %vm2219, %v2200
      %2250 = vst.msk [vmem:[%s227 + $0xf0] sm:$0xff] %vm2219, %v2201
      %2251 = vst.msk [vmem:[%s227 + $0xf8] sm:$0xff] %vm2219, %v2202
      %2252 = vst.msk [vmem:[%s227 + $0x100] sm:$0xff] %vm2219, %v2203
      %2253 = vst.msk [vmem:[%s227 + $0x108] sm:$0xff] %vm2219, %v2204
      %2254 = vst.msk [vmem:[%s227 + $0x110] sm:$0xff] %vm2219, %v2205
      %2255 = vst.msk [vmem:[%s227 + $0x118] sm:$0xff] %vm2219, %v2206
      %2256 = vst.msk [vmem:[%s227 + $0x120] sm:$0xff] %vm2219, %v2207
      %2257 = vst.msk [vmem:[%s227 + $0x128] sm:$0xff] %vm2219, %v2208
      %2258 = vst.msk [vmem:[%s227 + $0x130] sm:$0xff] %vm2219, %v2209
      %2259 = vst.msk [vmem:[%s227 + $0x138] sm:$0xff] %vm2219, %v2210
      %2260 = vst.msk [vmem:[%s227 + $0x140] sm:$0xff] %vm2219, %v2211
      %2261 = vst.msk [vmem:[%s227 + $0x148] sm:$0xff] %vm2219, %v2212
      %2262 = vst.msk [vmem:[%s227 + $0x150] sm:$0xff] %vm2219, %v2213
      %2263 = vst.msk [vmem:[%s227 + $0x158] sm:$0xff] %vm2219, %v2214
      %2264 = vst.msk [vmem:[%s227 + $0x160] sm:$0xff] %vm2219, %v2215
      %2265 = vst.msk [vmem:[%s227 + $0x168] sm:$0xff] %vm2219, %v2216
      %2266 = vst.msk [vmem:[%s227 + $0x170] sm:$0xff] %vm2219, %v2217
      %2267 = vst.msk [vmem:[%s227 + $0x178] sm:$0xff] %vm2219, %v2218
      %s2268 = smul.u32 48, %s17
      %p2269 = scmp.lt.s32.totalorder %s2268, 95
      %s2270 = scalar_select %p2269, %s2268, 95
      %s2271 = smul.addr %s2270, 8
      %s2272 = scalar_lea.vmem %s5, %s2271
      // Predicated region
      $region41: #{filter_module_forward.1} parent=39 // pred_check
        %p2273 = pneg %p145
      $region42: #{filter_module_forward.1} parent=39 // pred_check_branch
        %2275 = sbr.rel (%p2273) target = $region44
      $region43: #{filter_module_forward.1} parent=39 // pred_region
        %s2276 = smul.u32 48, %s17
      $region44: #{filter_module_forward.1} parent=39 // pred_fallthru
        _
    $region40: #{filter_module_forward.1} parent=5 // pred_fallthru
      _
    %p2277 = scmp.le.s32.totalorder 2, %s12
    // Predicated region
    $region45: #{filter_module_forward.1} parent=5 // pred_check
      %p2278 = pneg %p2277
    $region46: #{filter_module_forward.1} parent=5 // pred_check_branch
      %2280 = sbr.rel (%p2278) target = $region48
    $region47: #{filter_module_forward.1} parent=5 // pred_region
      %s2281 = ssub.s32 %s12, 2
      // Predicated region
      $region49: #{filter_module_forward.1} parent=47 // pred_check
        %p2282 = pneg %p151
      $region50: #{filter_module_forward.1} parent=47 // pred_check_branch
        %2284 = sbr.rel (%p2282) target = $region52
      $region51: #{filter_module_forward.1} parent=47 // pred_region
        %s2285 = smul.u32 48, %s18
        %p2286 = scmp.lt.s32.totalorder %s2285, 95
        %s2287 = scalar_select %p2286, %s2285, 95
        %s2288 = smul.addr %s2287, 8
        %s2289 = scalar_lea.vmem %s5, %s2288
      $region52: #{filter_module_forward.1} parent=47 // pred_fallthru
        _
    $region48: #{filter_module_forward.1} parent=5 // pred_fallthru
      _
  $region6: #{filter_module_forward.1} parent=0 // loop_footer
    %s16 = sadd.s32 1, %s12
  $region7: #{filter_module_forward.1} parent=0 // loop_footer_branch
    %11 = sbr.rel target = $region3
  $region8: #{filter_module_forward.1} parent=0 // loop_exit
    _

</llo_original>
